<compile_context>
chip_gen: v5e
topology: v5e:2x2
jax: 0.10.0
libtpu: 0.0.40
codegen_flags: <defaults>
</compile_context>

<pallas_src>
import functools
import math

import numpy as np
import jax
import jax.numpy as jnp
from jax import lax
from jax.experimental import pallas as pl
from jax.experimental.pallas import tpu as pltpu

EPS = 1e-5
VMEM_LIMIT = 32 * 1024 * 1024  # scoped-VMEM budget; safe on v5e/v6e/v7x


# --------------------------------------------------------------------------
# Kernels
# --------------------------------------------------------------------------
def conv_pass_kernel(*refs, H, pre_act):
    """One row-tile (TR = imgs_per_tile*H rows, W*C lanes) of a 3x3 conv.

    Optionally applies a folded per-channel affine + ReLU (the previous BN)
    to the input first (pre_act pass has two extra resident inputs).  The
    whole conv is a single MXU matmul against the fused (3*W*C, W*C) bf16
    band matrix; accumulation and all BN statistics stay in f32.  Also emits
    per-tile per-lane sum / sum-of-squares of the conv output so the wrapper
    can finalize global (training-mode) BN statistics.
    """
    if pre_act:
        x_ref, scale_ref, shift_ref, band_ref, bias_ref, y_ref, stat_ref = refs
    else:
        x_ref, band_ref, bias_ref, y_ref, stat_ref = refs
        scale_ref = shift_ref = None

    x = x_ref[...]                                           # (TR, WC) f32
    if pre_act:
        x = jnp.maximum(x * scale_ref[...] + shift_ref[...], 0.0)

    TR = x.shape[0]
    # hoisted row masks for the vertical taps (h position within each image)
    hh = lax.broadcasted_iota(jnp.int32, (TR, 1), 0) % H
    has_up = hh >= 1             # row r-1 lies inside the same image
    has_dn = hh <= H - 2         # row r+1 lies inside the same image

    x_up = jnp.where(has_up, pltpu.roll(x, shift=1, axis=0), 0.0)       # x[r-1]
    x_dn = jnp.where(has_dn, pltpu.roll(x, shift=TR - 1, axis=0), 0.0)  # x[r+1]

    # One fused 3*WC-deep MXU matmul: bf16 operands, f32 accumulation.
    xcat = jnp.concatenate([x_up, x, x_dn], axis=-1).astype(jnp.bfloat16)
    acc = jnp.dot(xcat, band_ref[...], preferred_element_type=jnp.float32)
    y = acc + bias_ref[...]                                  # f32

    y_ref[...] = y
    s = jnp.sum(y, axis=0, keepdims=True)                    # (1, WC)
    ss = jnp.sum(y * y, axis=0, keepdims=True)               # (1, WC)
    stat_ref[0] = jnp.concatenate([s, ss], axis=0)           # (2, WC)


def bn_res_relu_kernel(z_ref, x_ref, scale_ref, shift_ref, out_ref):
    """out = relu(z * scale + shift + residual) — lane-dense elementwise."""
    out_ref[...] = jnp.maximum(
        z_ref[...] * scale_ref[...] + shift_ref[...] + x_ref[...], 0.0)


# --------------------------------------------------------------------------
# Host-side helpers
# --------------------------------------------------------------------------
def build_band_matrix(w_flat, W, C):
    """(9, C, C) [3*kh+kw, ci, co] weights -> single (3*W*C, W*C) bf16 matrix.

    Row block kh, entry [(w+dw)*C + ci, w*C + co] = K[kh, kw, ci, co] with
    dw = kw-1; out-of-range w+dw entries are simply absent => SAME padding
    along W.  Row-block order matches the kernel's [x_up | x | x_dn] concat.
    """
    K = w_flat.reshape(3, 3, C, C).astype(jnp.float32)
    # shift matrix S with S[w+dw, w] = 1  <=>  np.eye(W, k=-dw)
    shift_mats = [jnp.asarray(np.eye(W, k=-dw, dtype=np.float32))
                  for dw in (-1, 0, 1)]
    bands = []
    for kh in range(3):
        band = sum(jnp.kron(shift_mats[kw], K[kh, kw]) for kw in range(3))
        bands.append(band)
    return jnp.concatenate(bands, axis=0).astype(jnp.bfloat16)   # (3*WC, WC)


def finalize_bn_affine(stats, gamma, beta, count, W, C):
    """(num_tiles, 2, W*C) f32 partial sums -> lane-tiled (1, W*C) scale/shift."""
    p = stats.reshape(-1, 2, W, C).sum(axis=(0, 2))          # (2, C)
    mean = p[0] / count
    var = jnp.maximum(p[1] / count - mean * mean, 0.0)       # biased, like PyTorch fwd
    scale = gamma.reshape(C) * lax.rsqrt(var + EPS)
    shift = beta.reshape(C) - mean * scale
    return (jnp.tile(scale.reshape(1, C), (1, W)),
            jnp.tile(shift.reshape(1, C), (1, W)))


def _pick_images_per_tile(N, H, max_rows=2048):
    """Row tiles align to image boundaries (no conv halo).  Prefer the largest
    sublane-aligned tile <= max_rows; among those, prefer leaving an even,
    >=2 grid-step count (pipelining on all chips, megacore balance on v7x)."""
    aligned = [d for d in range(1, N + 1) if N % d == 0 and (d * H) % 8 == 0]
    if not aligned:
        return N                       # single full-extent block (always legal)
    fitting = [d for d in aligned if d * H <= max_rows] or [min(aligned)]

    def rank(d):
        steps = N // d
        return (steps >= 2 and steps % 2 == 0, steps >= 2, d * H)

    return max(fitting, key=rank)


def _pick_elementwise_tile(NH, max_rows=4096):
    """Pass 3 is pure elementwise / HBM-bound: no image alignment needed, so
    just take the largest sublane-aligned divisor of NH within the cap."""
    best = None
    for d in range(1, NH + 1):
        if NH % d == 0 and d % 8 == 0 and d <= max_rows:
            best = d
    return best if best is not None else NH


def _conv_pass(x2d, band, bias, *, H, TR, scale=None, shift=None):
    NH, WC = x2d.shape
    num_tiles = NH // TR
    pre_act = scale is not None
    kernel = functools.partial(conv_pass_kernel, H=H, pre_act=pre_act)

    in_specs = [pl.BlockSpec((TR, WC), lambda i: (i, 0))]      # x tile (pipelined)
    operands = [x2d]
    if pre_act:
        in_specs += [pl.BlockSpec((1, WC), lambda i: (0, 0)),  # BN scale (resident)
                     pl.BlockSpec((1, WC), lambda i: (0, 0))]  # BN shift (resident)
        operands += [scale, shift]
    in_specs += [pl.BlockSpec((3 * WC, WC), lambda i: (0, 0)),  # fused band (resident)
                 pl.BlockSpec((1, WC), lambda i: (0, 0))]       # conv bias (resident)
    operands += [band, bias]

    return pl.pallas_call(
        kernel,
        out_shape=(jax.ShapeDtypeStruct((NH, WC), jnp.float32),
                   jax.ShapeDtypeStruct((num_tiles, 2, WC), jnp.float32)),
        grid=(num_tiles,),
        in_specs=in_specs,
        out_specs=(
            pl.BlockSpec((TR, WC), lambda i: (i, 0)),
            pl.BlockSpec((1, 2, WC), lambda i: (i, 0, 0)),
        ),
        compiler_params=pltpu.CompilerParams(
            dimension_semantics=("parallel",),
            vmem_limit_bytes=VMEM_LIMIT),
    )(*operands)


def _bn_residual_relu(z2d, x2d, scale, shift, *, TR):
    NH, WC = z2d.shape
    num_tiles = NH // TR
    return pl.pallas_call(
        bn_res_relu_kernel,
        out_shape=jax.ShapeDtypeStruct((NH, WC), jnp.float32),
        grid=(num_tiles,),
        in_specs=[
            pl.BlockSpec((TR, WC), lambda i: (i, 0)),
            pl.BlockSpec((TR, WC), lambda i: (i, 0)),
            pl.BlockSpec((1, WC), lambda i: (0, 0)),
            pl.BlockSpec((1, WC), lambda i: (0, 0)),
        ],
        out_specs=pl.BlockSpec((TR, WC), lambda i: (i, 0)),
        input_output_aliases={0: 0},          # reuse z2d's HBM buffer for the output
        compiler_params=pltpu.CompilerParams(
            dimension_semantics=("parallel",),
            vmem_limit_bytes=VMEM_LIMIT),
    )(z2d, x2d, scale, shift)


def residual_block_pallas(x_nchw, params):
    """x_nchw: (N, C, H, W) float32 (PyTorch convention). Returns NCHW."""
    N, C, H, W = x_nchw.shape
    WC = W * C
    NH = N * H
    w1, b1, g1, bt1, w2, b2, g2, bt2 = params

    # TODO(synk): the NCHW<->NHWC transposes below are full extra HBM round
    # trips; keep the surrounding model in the lane-dense (N*H, W*C) layout to
    # drop them entirely.
    # TODO(synk): this lane-dense band-matrix path targets small C (<=32 at
    # W=16); for large C (WC >= ~1024, esp. on v7x's 64 MiB VMEM) switch to an
    # im2col (rows, 9C) @ (9C, C) formulation — the band matrix grows as (W*C)^2.
    x2d = jnp.transpose(x_nchw, (0, 2, 3, 1)).reshape(NH, WC).astype(jnp.float32)

    band1 = build_band_matrix(w1, W, C)       # bf16, MXU operand
    band2 = build_band_matrix(w2, W, C)
    b1_wc = jnp.tile(b1.reshape(1, C), (1, W))
    b2_wc = jnp.tile(b2.reshape(1, C), (1, W))

    imgs = _pick_images_per_tile(N, H)
    TR = imgs * H
    TR3 = _pick_elementwise_tile(NH)          # pass 3 gets its own, larger tile
    count = N * H * W

    # pass 1: conv1 per tile + BN1 partial statistics
    y1, st1 = _conv_pass(x2d, band1, b1_wc, H=H, TR=TR)
    s1, t1 = finalize_bn_affine(st1, g1, bt1, count, W, C)

    # pass 2: BN1 affine + ReLU + conv2 per tile + BN2 partial statistics
    z2, st2 = _conv_pass(y1, band2, b2_wc, H=H, TR=TR, scale=s1, shift=t1)
    s2, t2 = finalize_bn_affine(st2, g2, bt2, count, W, C)

    # pass 3: BN2 affine + residual add + ReLU
    out2d = _bn_residual_relu(z2, x2d, s2, t2, TR=TR3)

    return jnp.transpose(out2d.reshape(N, H, W, C), (0, 3, 1, 2))


# --------------------------------------------------------------------------
# Pure-JAX reference and parameter init (for the in-script sanity check)
# --------------------------------------------------------------------------
def residual_block_ref(x_nchw, params):
    N, C, H, W = x_nchw.shape
    w1, b1, g1, bt1, w2, b2, g2, bt2 = params
    x = jnp.transpose(x_nchw, (0, 2, 3, 1)).astype(jnp.float32)  # NHWC

    def conv(y, w, b):
        w4 = w.reshape(3, 3, C, C)  # HWIO
        out = lax.conv_general_dilated(
            y, w4, window_strides=(1, 1), padding="SAME",
            dimension_numbers=("NHWC", "HWIO", "NHWC"),
            precision=lax.Precision.HIGHEST)
        return out + b.reshape(1, 1, 1, C)

    def bn(y, g, bt):
        mean = y.mean(axis=(0, 1, 2), keepdims=True)
        var = ((y - mean) ** 2).mean(axis=(0, 1, 2), keepdims=True)
        return (y - mean) * lax.rsqrt(var + EPS) * g.reshape(1, 1, 1, C) \
               + bt.reshape(1, 1, 1, C)

    y = jnp.maximum(bn(conv(x, w1, b1), g1, bt1), 0.0)
    y = bn(conv(y, w2, b2), g2, bt2)
    y = jnp.maximum(y + x, 0.0)
    return jnp.transpose(y, (0, 3, 1, 2))


def init_params(key, C):
    """Deterministic synthetic init (PyTorch-like fan-in scaling)."""
    k = 1.0 / math.sqrt(C * 9)
    ks = jax.random.split(key, 4)
    w1 = jax.random.uniform(ks[0], (9, C, C), jnp.float32, -k, k)
    b1 = jax.random.uniform(ks[1], (1, C), jnp.float32, -k, k)
    w2 = jax.random.uniform(ks[2], (9, C, C), jnp.float32, -k, k)
    b2 = jax.random.uniform(ks[3], (1, C), jnp.float32, -k, k)
    g1 = jnp.ones((1, C), jnp.float32)
    bt1 = jnp.zeros((1, C), jnp.float32)
    g2 = jnp.ones((1, C), jnp.float32)
    bt2 = jnp.zeros((1, C), jnp.float32)
    return (w1, b1, g1, bt1, w2, b2, g2, bt2)


if __name__ == "__main__":
    N, C, H, W = 2, 8, 16, 16  # small shapes consistent with ResidualBlock(8)

    root = jax.random.PRNGKey(0)
    kx, kp = jax.random.split(root)
    x = jax.random.normal(kx, (N, C, H, W), jnp.float32)
    params = init_params(kp, C)

    out = jax.jit(residual_block_pallas)(x, params)
    out = jax.block_until_ready(out)

    ref = residual_block_ref(x, params)
    assert out.shape == (N, C, H, W)
    assert jnp.allclose(out, ref, rtol=2e-2, atol=2e-2), "mismatch vs reference"

    print("KERNEL_OK")
</pallas_src>

<mosaic_0001>
module attributes {stable_mosaic.version = 11 : i64} {
  func.func @conv_pass_kernel(%arg0: i32, %arg1: memref<16x128xf32, #tpu.memory_space<vmem>>, %arg2: memref<384x128xbf16, #tpu.memory_space<vmem>>, %arg3: memref<1x128xf32, #tpu.memory_space<vmem>>, %arg4: memref<16x128xf32, #tpu.memory_space<vmem>>, %arg5: memref<1x2x128xf32, #tpu.memory_space<vmem>>) attributes {dimension_semantics = [#tpu.dimension_semantics<parallel>], iteration_bounds = array<i64: 2>, scalar_prefetch = 0 : i64, scratch_operands = 0 : i64, tpu.core_type = #tpu.core_type<tc>, window_params = [{transform_indices = @transform_0, window_bounds = array<i64: 16, 128>}, {pipeline_mode = #tpu.pipeline_mode<synchronous>, transform_indices = @transform_1, window_bounds = array<i64: 384, 128>}, {pipeline_mode = #tpu.pipeline_mode<synchronous>, transform_indices = @transform_2, window_bounds = array<i64: 1, 128>}, {transform_indices = @transform_3, window_bounds = array<i64: 16, 128>}, {transform_indices = @transform_4, window_bounds = array<i64: 1, 2, 128>}]} {
    %c0 = arith.constant 0 : index
    %c0_0 = arith.constant 0 : index
    %0 = vector.load %arg1[%c0, %c0_0] : memref<16x128xf32, #tpu.memory_space<vmem>>, vector<16x128xf32>
    %1 = tpu.iota {dimensions = array<i32: 0>} : vector<16x1xi32>
    %c16_i32 = arith.constant 16 : i32
    %c0_i32 = arith.constant 0 : i32
    %2 = arith.cmpi eq, %c16_i32, %c0_i32 : i32
    %c1_i32 = arith.constant 1 : i32
    %3 = arith.select %2, %c1_i32, %c16_i32 : i32
    %4 = vector.broadcast %3 : i32 to vector<16x1xi32>
    %5 = arith.remsi %1, %4 : vector<16x1xi32>
    %c0_i32_1 = arith.constant 0 : i32
    %6 = vector.broadcast %c0_i32_1 : i32 to vector<16x1xi32>
    %7 = arith.cmpi ne, %5, %6 : vector<16x1xi32>
    %c0_i32_2 = arith.constant 0 : i32
    %8 = vector.broadcast %c0_i32_2 : i32 to vector<16x1xi32>
    %9 = arith.cmpi slt, %5, %8 : vector<16x1xi32>
    %c0_i32_3 = arith.constant 0 : i32
    %10 = arith.cmpi slt, %3, %c0_i32_3 : i32
    %11 = vector.broadcast %10 : i1 to vector<16x1xi1>
    %12 = vector.broadcast %11 : vector<16x1xi1> to vector<16x1xi1>
    %13 = arith.xori %9, %12 : vector<16x1xi1>
    %14 = arith.andi %13, %7 : vector<16x1xi1>
    %15 = vector.broadcast %3 : i32 to vector<16x1xi32>
    %16 = arith.addi %5, %15 : vector<16x1xi32>
    %17 = arith.select %14, %16, %5 : vector<16x1xi1>, vector<16x1xi32>
    %c1_i32_4 = arith.constant 1 : i32
    %18 = vector.broadcast %c1_i32_4 : i32 to vector<16x1xi32>
    %19 = arith.cmpi sge, %17, %18 : vector<16x1xi32>
    %c14_i32 = arith.constant 14 : i32
    %20 = vector.broadcast %c14_i32 : i32 to vector<16x1xi32>
    %21 = arith.cmpi sle, %17, %20 : vector<16x1xi32>
    %c1_i32_5 = arith.constant 1 : i32
    %22 = tpu.dynamic_rotate %0 by %c1_i32_5 dim 0 : vector<16x128xf32>, i32 -> vector<16x128xf32>
    %cst = arith.constant 0.000000e+00 : f32
    %23 = vector.shape_cast %19 : vector<16x1xi1> to vector<16x1xi1>
    %24 = vector.broadcast %23 : vector<16x1xi1> to vector<16x128xi1>
    %25 = vector.broadcast %cst : f32 to vector<16x128xf32>
    %26 = arith.select %24, %22, %25 : vector<16x128xi1>, vector<16x128xf32>
    %c15_i32 = arith.constant 15 : i32
    %27 = tpu.dynamic_rotate %0 by %c15_i32 dim 0 : vector<16x128xf32>, i32 -> vector<16x128xf32>
    %cst_6 = arith.constant 0.000000e+00 : f32
    %28 = vector.shape_cast %21 : vector<16x1xi1> to vector<16x1xi1>
    %29 = vector.broadcast %28 : vector<16x1xi1> to vector<16x128xi1>
    %30 = vector.broadcast %cst_6 : f32 to vector<16x128xf32>
    %31 = arith.select %29, %27, %30 : vector<16x128xi1>, vector<16x128xf32>
    %32 = tpu.concatenate %26, %0, %31 in 1 : vector<16x128xf32>, vector<16x128xf32>, vector<16x128xf32> -> vector<16x384xf32>
    %33 = arith.truncf %32 : vector<16x384xf32> to vector<16x384xbf16>
    %c0_7 = arith.constant 0 : index
    %c0_8 = arith.constant 0 : index
    %34 = vector.load %arg2[%c0_7, %c0_8] : memref<384x128xbf16, #tpu.memory_space<vmem>>, vector<384x128xbf16>
    %cst_9 = arith.constant dense<0.000000e+00> : vector<16x128xf32>
    %35 = tpu.matmul %33, %34, %cst_9 {dimension_numbers = #tpu.dot_dimension_numbers<[1], [0], [0], [1], [0, 0, 1, 1], [], []>} : vector<16x384xbf16>, vector<384x128xbf16>, vector<16x128xf32> -> vector<16x128xf32>
    %c0_10 = arith.constant 0 : index
    %c0_11 = arith.constant 0 : index
    %36 = vector.load %arg3[%c0_10, %c0_11] : memref<1x128xf32, #tpu.memory_space<vmem>>, vector<1x128xf32>
    %37 = vector.broadcast %36 : vector<1x128xf32> to vector<16x128xf32>
    %38 = arith.addf %35, %37 : vector<16x128xf32>
    %c0_12 = arith.constant 0 : index
    %c0_13 = arith.constant 0 : index
    %39 = vector.load %arg4[%c0_12, %c0_13] : memref<16x128xf32, #tpu.memory_space<vmem>>, vector<16x128xf32>
    tpu.vector_store %arg4[%c0_12, %c0_13], %38 {strides = array<i32>} : memref<16x128xf32, #tpu.memory_space<vmem>>, vector<16x128xf32>,
    %cst_14 = arith.constant dense<0.000000e+00> : vector<128xf32>
    %40 = vector.multi_reduction <add>, %38, %cst_14 [0] : vector<16x128xf32> to vector<128xf32>
    %41 = vector.shape_cast %40 : vector<128xf32> to vector<1x128xf32>
    %42 = arith.mulf %38, %38 : vector<16x128xf32>
    %cst_15 = arith.constant dense<0.000000e+00> : vector<128xf32>
    %43 = vector.multi_reduction <add>, %42, %cst_15 [0] : vector<16x128xf32> to vector<128xf32>
    %44 = vector.shape_cast %43 : vector<128xf32> to vector<1x128xf32>
    %45 = tpu.concatenate %41, %44 in 0 : vector<1x128xf32>, vector<1x128xf32> -> vector<2x128xf32>
    %c0_16 = arith.constant 0 : index
    %c0_17 = arith.constant 0 : index
    %c0_18 = arith.constant 0 : index
    %46 = vector.load %arg5[%c0_16, %c0_17, %c0_18] : memref<1x2x128xf32, #tpu.memory_space<vmem>>, vector<1x2x128xf32>
    %47 = vector.shape_cast %46 : vector<1x2x128xf32> to vector<2x128xf32>
    %48 = vector.shape_cast %45 : vector<2x128xf32> to vector<1x2x128xf32>
    tpu.vector_store %arg5[%c0_16, %c0_17, %c0_18], %48 {strides = array<i32>} : memref<1x2x128xf32, #tpu.memory_space<vmem>>, vector<1x2x128xf32>,
    return
  }
  func.func @transform_0(%arg0: i32) -> (i32, i32) {
    %c0_i32 = arith.constant 0 : i32
    %c0_i32_0 = arith.constant 0 : i32
    return %arg0, %c0_i32 : i32, i32
  }
  func.func @transform_1(%arg0: i32) -> (i32, i32) {
    %c0_i32 = arith.constant 0 : i32
    %c0_i32_0 = arith.constant 0 : i32
    %c0_i32_1 = arith.constant 0 : i32
    return %c0_i32, %c0_i32_0 : i32, i32
  }
  func.func @transform_2(%arg0: i32) -> (i32, i32) {
    %c0_i32 = arith.constant 0 : i32
    %c0_i32_0 = arith.constant 0 : i32
    %c0_i32_1 = arith.constant 0 : i32
    return %c0_i32, %c0_i32_0 : i32, i32
  }
  func.func @transform_3(%arg0: i32) -> (i32, i32) {
    %c0_i32 = arith.constant 0 : i32
    %c0_i32_0 = arith.constant 0 : i32
    return %arg0, %c0_i32 : i32, i32
  }
  func.func @transform_4(%arg0: i32) -> (i32, i32, i32) {
    %c0_i32 = arith.constant 0 : i32
    %c0_i32_0 = arith.constant 0 : i32
    %c0_i32_1 = arith.constant 0 : i32
    return %arg0, %c0_i32, %c0_i32_0 : i32, i32, i32
  }
}

module attributes {stable_mosaic.version = 11 : i64} {
  func.func @bn_res_relu_kernel(%arg0: i32, %arg1: memref<32x128xf32, #tpu.memory_space<vmem>>, %arg2: memref<32x128xf32, #tpu.memory_space<vmem>>, %arg3: memref<1x128xf32, #tpu.memory_space<vmem>>, %arg4: memref<1x128xf32, #tpu.memory_space<vmem>>, %arg5: memref<32x128xf32, #tpu.memory_space<vmem>>) attributes {dimension_semantics = [#tpu.dimension_semantics<parallel>], iteration_bounds = array<i64: 1>, scalar_prefetch = 0 : i64, scratch_operands = 0 : i64, tpu.core_type = #tpu.core_type<tc>, window_params = [{transform_indices = @transform_0, window_bounds = array<i64: 32, 128>}, {transform_indices = @transform_1, window_bounds = array<i64: 32, 128>}, {pipeline_mode = #tpu.pipeline_mode<synchronous>, transform_indices = @transform_2, window_bounds = array<i64: 1, 128>}, {pipeline_mode = #tpu.pipeline_mode<synchronous>, transform_indices = @transform_3, window_bounds = array<i64: 1, 128>}, {transform_indices = @transform_4, window_bounds = array<i64: 32, 128>}]} {
    %c0 = arith.constant 0 : index
    %c0_0 = arith.constant 0 : index
    %0 = vector.load %arg1[%c0, %c0_0] : memref<32x128xf32, #tpu.memory_space<vmem>>, vector<32x128xf32>
    %c0_1 = arith.constant 0 : index
    %c0_2 = arith.constant 0 : index
    %1 = vector.load %arg3[%c0_1, %c0_2] : memref<1x128xf32, #tpu.memory_space<vmem>>, vector<1x128xf32>
    %2 = vector.broadcast %1 : vector<1x128xf32> to vector<32x128xf32>
    %3 = arith.mulf %0, %2 : vector<32x128xf32>
    %c0_3 = arith.constant 0 : index
    %c0_4 = arith.constant 0 : index
    %4 = vector.load %arg4[%c0_3, %c0_4] : memref<1x128xf32, #tpu.memory_space<vmem>>, vector<1x128xf32>
    %5 = vector.broadcast %4 : vector<1x128xf32> to vector<32x128xf32>
    %6 = arith.addf %3, %5 : vector<32x128xf32>
    %c0_5 = arith.constant 0 : index
    %c0_6 = arith.constant 0 : index
    %7 = vector.load %arg2[%c0_5, %c0_6] : memref<32x128xf32, #tpu.memory_space<vmem>>, vector<32x128xf32>
    %8 = arith.addf %6, %7 : vector<32x128xf32>
    %cst = arith.constant 0.000000e+00 : f32
    %9 = vector.broadcast %cst : f32 to vector<32x128xf32>
    %10 = arith.maximumf %8, %9 : vector<32x128xf32>
    %c0_7 = arith.constant 0 : index
    %c0_8 = arith.constant 0 : index
    %11 = vector.load %arg5[%c0_7, %c0_8] : memref<32x128xf32, #tpu.memory_space<vmem>>, vector<32x128xf32>
    tpu.vector_store %arg5[%c0_7, %c0_8], %10 {strides = array<i32>} : memref<32x128xf32, #tpu.memory_space<vmem>>, vector<32x128xf32>,
    return
  }
  func.func @transform_0(%arg0: i32) -> (i32, i32) {
    %c0_i32 = arith.constant 0 : i32
    %c0_i32_0 = arith.constant 0 : i32
    return %arg0, %c0_i32 : i32, i32
  }
  func.func @transform_1(%arg0: i32) -> (i32, i32) {
    %c0_i32 = arith.constant 0 : i32
    %c0_i32_0 = arith.constant 0 : i32
    return %arg0, %c0_i32 : i32, i32
  }
  func.func @transform_2(%arg0: i32) -> (i32, i32) {
    %c0_i32 = arith.constant 0 : i32
    %c0_i32_0 = arith.constant 0 : i32
    %c0_i32_1 = arith.constant 0 : i32
    return %c0_i32, %c0_i32_0 : i32, i32
  }
  func.func @transform_3(%arg0: i32) -> (i32, i32) {
    %c0_i32 = arith.constant 0 : i32
    %c0_i32_0 = arith.constant 0 : i32
    %c0_i32_1 = arith.constant 0 : i32
    return %c0_i32, %c0_i32_0 : i32, i32
  }
  func.func @transform_4(%arg0: i32) -> (i32, i32) {
    %c0_i32 = arith.constant 0 : i32
    %c0_i32_0 = arith.constant 0 : i32
    return %arg0, %c0_i32 : i32, i32
  }
}

module attributes {stable_mosaic.version = 11 : i64} {
  func.func @conv_pass_kernel(%arg0: i32, %arg1: memref<16x128xf32, #tpu.memory_space<vmem>>, %arg2: memref<1x128xf32, #tpu.memory_space<vmem>>, %arg3: memref<1x128xf32, #tpu.memory_space<vmem>>, %arg4: memref<384x128xbf16, #tpu.memory_space<vmem>>, %arg5: memref<1x128xf32, #tpu.memory_space<vmem>>, %arg6: memref<16x128xf32, #tpu.memory_space<vmem>>, %arg7: memref<1x2x128xf32, #tpu.memory_space<vmem>>) attributes {dimension_semantics = [#tpu.dimension_semantics<parallel>], iteration_bounds = array<i64: 2>, scalar_prefetch = 0 : i64, scratch_operands = 0 : i64, tpu.core_type = #tpu.core_type<tc>, window_params = [{transform_indices = @transform_0, window_bounds = array<i64: 16, 128>}, {pipeline_mode = #tpu.pipeline_mode<synchronous>, transform_indices = @transform_1, window_bounds = array<i64: 1, 128>}, {pipeline_mode = #tpu.pipeline_mode<synchronous>, transform_indices = @transform_2, window_bounds = array<i64: 1, 128>}, {pipeline_mode = #tpu.pipeline_mode<synchronous>, transform_indices = @transform_3, window_bounds = array<i64: 384, 128>}, {pipeline_mode = #tpu.pipeline_mode<synchronous>, transform_indices = @transform_4, window_bounds = array<i64: 1, 128>}, {transform_indices = @transform_5, window_bounds = array<i64: 16, 128>}, {transform_indices = @transform_6, window_bounds = array<i64: 1, 2, 128>}]} {
    %c0 = arith.constant 0 : index
    %c0_0 = arith.constant 0 : index
    %0 = vector.load %arg1[%c0, %c0_0] : memref<16x128xf32, #tpu.memory_space<vmem>>, vector<16x128xf32>
    %c0_1 = arith.constant 0 : index
    %c0_2 = arith.constant 0 : index
    %1 = vector.load %arg2[%c0_1, %c0_2] : memref<1x128xf32, #tpu.memory_space<vmem>>, vector<1x128xf32>
    %2 = vector.broadcast %1 : vector<1x128xf32> to vector<16x128xf32>
    %3 = arith.mulf %0, %2 : vector<16x128xf32>
    %c0_3 = arith.constant 0 : index
    %c0_4 = arith.constant 0 : index
    %4 = vector.load %arg3[%c0_3, %c0_4] : memref<1x128xf32, #tpu.memory_space<vmem>>, vector<1x128xf32>
    %5 = vector.broadcast %4 : vector<1x128xf32> to vector<16x128xf32>
    %6 = arith.addf %3, %5 : vector<16x128xf32>
    %cst = arith.constant 0.000000e+00 : f32
    %7 = vector.broadcast %cst : f32 to vector<16x128xf32>
    %8 = arith.maximumf %6, %7 : vector<16x128xf32>
    %9 = tpu.iota {dimensions = array<i32: 0>} : vector<16x1xi32>
    %c16_i32 = arith.constant 16 : i32
    %c0_i32 = arith.constant 0 : i32
    %10 = arith.cmpi eq, %c16_i32, %c0_i32 : i32
    %c1_i32 = arith.constant 1 : i32
    %11 = arith.select %10, %c1_i32, %c16_i32 : i32
    %12 = vector.broadcast %11 : i32 to vector<16x1xi32>
    %13 = arith.remsi %9, %12 : vector<16x1xi32>
    %c0_i32_5 = arith.constant 0 : i32
    %14 = vector.broadcast %c0_i32_5 : i32 to vector<16x1xi32>
    %15 = arith.cmpi ne, %13, %14 : vector<16x1xi32>
    %c0_i32_6 = arith.constant 0 : i32
    %16 = vector.broadcast %c0_i32_6 : i32 to vector<16x1xi32>
    %17 = arith.cmpi slt, %13, %16 : vector<16x1xi32>
    %c0_i32_7 = arith.constant 0 : i32
    %18 = arith.cmpi slt, %11, %c0_i32_7 : i32
    %19 = vector.broadcast %18 : i1 to vector<16x1xi1>
    %20 = vector.broadcast %19 : vector<16x1xi1> to vector<16x1xi1>
    %21 = arith.xori %17, %20 : vector<16x1xi1>
    %22 = arith.andi %21, %15 : vector<16x1xi1>
    %23 = vector.broadcast %11 : i32 to vector<16x1xi32>
    %24 = arith.addi %13, %23 : vector<16x1xi32>
    %25 = arith.select %22, %24, %13 : vector<16x1xi1>, vector<16x1xi32>
    %c1_i32_8 = arith.constant 1 : i32
    %26 = vector.broadcast %c1_i32_8 : i32 to vector<16x1xi32>
    %27 = arith.cmpi sge, %25, %26 : vector<16x1xi32>
    %c14_i32 = arith.constant 14 : i32
    %28 = vector.broadcast %c14_i32 : i32 to vector<16x1xi32>
    %29 = arith.cmpi sle, %25, %28 : vector<16x1xi32>
    %c1_i32_9 = arith.constant 1 : i32
    %30 = tpu.dynamic_rotate %8 by %c1_i32_9 dim 0 : vector<16x128xf32>, i32 -> vector<16x128xf32>
    %cst_10 = arith.constant 0.000000e+00 : f32
    %31 = vector.shape_cast %27 : vector<16x1xi1> to vector<16x1xi1>
    %32 = vector.broadcast %31 : vector<16x1xi1> to vector<16x128xi1>
    %33 = vector.broadcast %cst_10 : f32 to vector<16x128xf32>
    %34 = arith.select %32, %30, %33 : vector<16x128xi1>, vector<16x128xf32>
    %c15_i32 = arith.constant 15 : i32
    %35 = tpu.dynamic_rotate %8 by %c15_i32 dim 0 : vector<16x128xf32>, i32 -> vector<16x128xf32>
    %cst_11 = arith.constant 0.000000e+00 : f32
    %36 = vector.shape_cast %29 : vector<16x1xi1> to vector<16x1xi1>
    %37 = vector.broadcast %36 : vector<16x1xi1> to vector<16x128xi1>
    %38 = vector.broadcast %cst_11 : f32 to vector<16x128xf32>
    %39 = arith.select %37, %35, %38 : vector<16x128xi1>, vector<16x128xf32>
    %40 = tpu.concatenate %34, %8, %39 in 1 : vector<16x128xf32>, vector<16x128xf32>, vector<16x128xf32> -> vector<16x384xf32>
    %41 = arith.truncf %40 : vector<16x384xf32> to vector<16x384xbf16>
    %c0_12 = arith.constant 0 : index
    %c0_13 = arith.constant 0 : index
    %42 = vector.load %arg4[%c0_12, %c0_13] : memref<384x128xbf16, #tpu.memory_space<vmem>>, vector<384x128xbf16>
    %cst_14 = arith.constant dense<0.000000e+00> : vector<16x128xf32>
    %43 = tpu.matmul %41, %42, %cst_14 {dimension_numbers = #tpu.dot_dimension_numbers<[1], [0], [0], [1], [0, 0, 1, 1], [], []>} : vector<16x384xbf16>, vector<384x128xbf16>, vector<16x128xf32> -> vector<16x128xf32>
    %c0_15 = arith.constant 0 : index
    %c0_16 = arith.constant 0 : index
    %44 = vector.load %arg5[%c0_15, %c0_16] : memref<1x128xf32, #tpu.memory_space<vmem>>, vector<1x128xf32>
    %45 = vector.broadcast %44 : vector<1x128xf32> to vector<16x128xf32>
    %46 = arith.addf %43, %45 : vector<16x128xf32>
    %c0_17 = arith.constant 0 : index
    %c0_18 = arith.constant 0 : index
    %47 = vector.load %arg6[%c0_17, %c0_18] : memref<16x128xf32, #tpu.memory_space<vmem>>, vector<16x128xf32>
    tpu.vector_store %arg6[%c0_17, %c0_18], %46 {strides = array<i32>} : memref<16x128xf32, #tpu.memory_space<vmem>>, vector<16x128xf32>,
    %cst_19 = arith.constant dense<0.000000e+00> : vector<128xf32>
    %48 = vector.multi_reduction <add>, %46, %cst_19 [0] : vector<16x128xf32> to vector<128xf32>
    %49 = vector.shape_cast %48 : vector<128xf32> to vector<1x128xf32>
    %50 = arith.mulf %46, %46 : vector<16x128xf32>
    %cst_20 = arith.constant dense<0.000000e+00> : vector<128xf32>
    %51 = vector.multi_reduction <add>, %50, %cst_20 [0] : vector<16x128xf32> to vector<128xf32>
    %52 = vector.shape_cast %51 : vector<128xf32> to vector<1x128xf32>
    %53 = tpu.concatenate %49, %52 in 0 : vector<1x128xf32>, vector<1x128xf32> -> vector<2x128xf32>
    %c0_21 = arith.constant 0 : index
    %c0_22 = arith.constant 0 : index
    %c0_23 = arith.constant 0 : index
    %54 = vector.load %arg7[%c0_21, %c0_22, %c0_23] : memref<1x2x128xf32, #tpu.memory_space<vmem>>, vector<1x2x128xf32>
    %55 = vector.shape_cast %54 : vector<1x2x128xf32> to vector<2x128xf32>
    %56 = vector.shape_cast %53 : vector<2x128xf32> to vector<1x2x128xf32>
    tpu.vector_store %arg7[%c0_21, %c0_22, %c0_23], %56 {strides = array<i32>} : memref<1x2x128xf32, #tpu.memory_space<vmem>>, vector<1x2x128xf32>,
    return
  }
  func.func @transform_0(%arg0: i32) -> (i32, i32) {
    %c0_i32 = arith.constant 0 : i32
    %c0_i32_0 = arith.constant 0 : i32
    return %arg0, %c0_i32 : i32, i32
  }
  func.func @transform_1(%arg0: i32) -> (i32, i32) {
    %c0_i32 = arith.constant 0 : i32
    %c0_i32_0 = arith.constant 0 : i32
    %c0_i32_1 = arith.constant 0 : i32
    return %c0_i32, %c0_i32_0 : i32, i32
  }
  func.func @transform_2(%arg0: i32) -> (i32, i32) {
    %c0_i32 = arith.constant 0 : i32
    %c0_i32_0 = arith.constant 0 : i32
    %c0_i32_1 = arith.constant 0 : i32
    return %c0_i32, %c0_i32_0 : i32, i32
  }
  func.func @transform_3(%arg0: i32) -> (i32, i32) {
    %c0_i32 = arith.constant 0 : i32
    %c0_i32_0 = arith.constant 0 : i32
    %c0_i32_1 = arith.constant 0 : i32
    return %c0_i32, %c0_i32_0 : i32, i32
  }
  func.func @transform_4(%arg0: i32) -> (i32, i32) {
    %c0_i32 = arith.constant 0 : i32
    %c0_i32_0 = arith.constant 0 : i32
    %c0_i32_1 = arith.constant 0 : i32
    return %c0_i32, %c0_i32_0 : i32, i32
  }
  func.func @transform_5(%arg0: i32) -> (i32, i32) {
    %c0_i32 = arith.constant 0 : i32
    %c0_i32_0 = arith.constant 0 : i32
    return %arg0, %c0_i32 : i32, i32
  }
  func.func @transform_6(%arg0: i32) -> (i32, i32, i32) {
    %c0_i32 = arith.constant 0 : i32
    %c0_i32_0 = arith.constant 0 : i32
    %c0_i32_1 = arith.constant 0 : i32
    return %arg0, %c0_i32, %c0_i32_0 : i32, i32, i32
  }
}

</mosaic_0001>

<llo_original>
// kernel: residual_block_pallas.3
$region0: #{residual_block_pallas.3}
  #allocation0 [shape = 'u32[]', space=smem, size = 0x4, offset = 0x4, fixed_abs, tag = 'smem constant byte address 0x4 - core index']
  #allocation1 [shape = 'u32[72,128]{1,0:T(1,128)}', space=vmem, size = 0x9000, scoped, tag = 'internal scratch']
  %s0 = inlined_call_operand.vmem [shape: f32[32,128], index: 0, kind: input, shape index: {}]
  %s1 = inlined_call_operand.vmem [shape: bf16[384,128], index: 1, kind: input, shape index: {}]
  %s2 = inlined_call_operand.vmem [shape: f32[1,128], index: 2, kind: input, shape index: {}]
  %s3 = inlined_call_operand.vmem [shape: f32[32,128], index: 3, kind: output, shape index: {0}]
  %s4 = inlined_call_operand.vmem [shape: f32[2,2,128], index: 4, kind: output, shape index: {1}]
  %5 = xla_tuple %s3, %s4
  %s6 = sld [smem:[#allocation0]]
  $region53: #{residual_block_pallas.3} parent=0
    _
  %s8 = ssub.s32 1, %s6
  %s9 = scalar_select 0, %s8, %s6
  loop: start=0, step=1, limit=4
  $region2: #{residual_block_pallas.3} parent=0 // loop_pre_header
    _
  $region3: #{residual_block_pallas.3} parent=0 // loop_header
    %s11 = sphi 0, %s15
    %p12 = scmp.ge.s32.totalorder %s11, 4
    %s21 = sphi 0, %s23
    %s24 = sphi 0, %s21
    %s25 = sphi 0, %s24
    %s41 = sphi 0, %s25
    %s45 = sphi 0, %s45
    %s47 = sphi 0, %s45
    %s48 = sphi 0, %s47
    %s62 = sphi 0, %s48
    %s66 = sphi 0, %s66
    %s68 = sphi 0, %s66
    %s69 = sphi 0, %s68
    %s83 = sphi 0, %s69
    %s89 = sphi 0, %s91
    %s92 = sphi 0, %s89
    %s93 = sphi 0, %s92
    %s109 = sphi 0, %s93
    %s115 = sphi 0, %s117
    %s118 = sphi 0, %s115
    %s119 = sphi 0, %s118
    %s135 = sphi 0, %s119
  $region4: #{residual_block_pallas.3} parent=0 // loop_header_branch
    %14 = sbr.rel (%p12) target = $region8
  $region5: #{residual_block_pallas.3} parent=0 // loop_body
    %s16 = ssub.s32 %s11, 1
    %s17 = ssub.s32 %s11, 2
    %s18 = sadd.s32 %s11, 1
    %s19 = ssub.s32 %s11, %s18
    %p20 = scmp.eq.s32.totalorder %s19, 0
    %s22 = sadd.s32 %s21, 1
    %s23 = scalar_select %p20, %s21, %s22
    %p26 = pneg %p20
    %p27 = scmp.eq.s32.totalorder %s11, 1
    %p28 = por %p26, %p27
    %p29 = scmp.ne.s32.totalorder %s21, %s24
    %p30 = scmp.eq.s32.totalorder %s11, 0
    %p31 = por %p29, %p30
    %p32 = scmp.ne.s32.totalorder %s21, %s24
    %p33 = scmp.eq.s32.totalorder %s16, 1
    %p34 = por %p32, %p33
    %p35 = scmp.ne.s32.totalorder %s24, %s25
    %p36 = scmp.eq.s32.totalorder %s16, 0
    %p37 = por %p35, %p36
    %p38 = scmp.ne.s32.totalorder %s24, %s25
    %p39 = scmp.eq.s32.totalorder %s17, 1
    %p40 = por %p38, %p39
    %p42 = scmp.ne.s32.totalorder %s25, %s41
    %p43 = scmp.eq.s32.totalorder %s17, 0
    %p44 = por %p42, %p43
    %s46 = sadd.s32 %s45, 1
    %p49 = scmp.eq.s32.totalorder %s11, 1
    %p50 = scmp.ne.s32.totalorder %s45, %s47
    %p51 = scmp.eq.s32.totalorder %s11, 0
    %p52 = por %p50, %p51
    %p53 = scmp.ne.s32.totalorder %s45, %s47
    %p54 = scmp.eq.s32.totalorder %s16, 1
    %p55 = por %p53, %p54
    %p56 = scmp.ne.s32.totalorder %s47, %s48
    %p57 = scmp.eq.s32.totalorder %s16, 0
    %p58 = por %p56, %p57
    %p59 = scmp.ne.s32.totalorder %s47, %s48
    %p60 = scmp.eq.s32.totalorder %s17, 1
    %p61 = por %p59, %p60
    %p63 = scmp.ne.s32.totalorder %s48, %s62
    %p64 = scmp.eq.s32.totalorder %s17, 0
    %p65 = por %p63, %p64
    %s67 = sadd.s32 %s66, 1
    %p70 = scmp.eq.s32.totalorder %s11, 1
    %p71 = scmp.ne.s32.totalorder %s66, %s68
    %p72 = scmp.eq.s32.totalorder %s11, 0
    %p73 = por %p71, %p72
    %p74 = scmp.ne.s32.totalorder %s66, %s68
    %p75 = scmp.eq.s32.totalorder %s16, 1
    %p76 = por %p74, %p75
    %p77 = scmp.ne.s32.totalorder %s68, %s69
    %p78 = scmp.eq.s32.totalorder %s16, 0
    %p79 = por %p77, %p78
    %p80 = scmp.ne.s32.totalorder %s68, %s69
    %p81 = scmp.eq.s32.totalorder %s17, 1
    %p82 = por %p80, %p81
    %p84 = scmp.ne.s32.totalorder %s69, %s83
    %p85 = scmp.eq.s32.totalorder %s17, 0
    %p86 = por %p84, %p85
    %s87 = ssub.s32 %s11, %s18
    %p88 = scmp.eq.s32.totalorder %s87, 0
    %s90 = sadd.s32 %s89, 1
    %s91 = scalar_select %p88, %s89, %s90
    %p94 = pneg %p88
    %p95 = scmp.eq.s32.totalorder %s11, 1
    %p96 = por %p94, %p95
    %p97 = scmp.ne.s32.totalorder %s89, %s92
    %p98 = scmp.eq.s32.totalorder %s11, 0
    %p99 = por %p97, %p98
    %p100 = scmp.ne.s32.totalorder %s89, %s92
    %p101 = scmp.eq.s32.totalorder %s16, 1
    %p102 = por %p100, %p101
    %p103 = scmp.ne.s32.totalorder %s92, %s93
    %p104 = scmp.eq.s32.totalorder %s16, 0
    %p105 = por %p103, %p104
    %p106 = scmp.ne.s32.totalorder %s92, %s93
    %p107 = scmp.eq.s32.totalorder %s17, 1
    %p108 = por %p106, %p107
    %p110 = scmp.ne.s32.totalorder %s93, %s109
    %p111 = scmp.eq.s32.totalorder %s17, 0
    %p112 = por %p110, %p111
    %s113 = ssub.s32 %s11, %s18
    %p114 = scmp.eq.s32.totalorder %s113, 0
    %s116 = sadd.s32 %s115, 1
    %s117 = scalar_select %p114, %s115, %s116
    %p120 = pneg %p114
    %p121 = scmp.eq.s32.totalorder %s11, 1
    %p122 = por %p120, %p121
    %p123 = scmp.ne.s32.totalorder %s115, %s118
    %p124 = scmp.eq.s32.totalorder %s11, 0
    %p125 = por %p123, %p124
    %p126 = scmp.ne.s32.totalorder %s115, %s118
    %p127 = scmp.eq.s32.totalorder %s16, 1
    %p128 = por %p126, %p127
    %p129 = scmp.ne.s32.totalorder %s118, %s119
    %p130 = scmp.eq.s32.totalorder %s16, 0
    %p131 = por %p129, %p130
    %p132 = scmp.ne.s32.totalorder %s118, %s119
    %p133 = scmp.eq.s32.totalorder %s17, 1
    %p134 = por %p132, %p133
    %p136 = scmp.ne.s32.totalorder %s119, %s135
    %p137 = scmp.eq.s32.totalorder %s17, 0
    %p138 = por %p136, %p137
    %p139 = scmp.le.s32.totalorder 1, %s11
    %p140 = scmp.lt.s32.totalorder %s11, 3
    %p141 = pnand %p139, %p140
    %p142 = pneg %p141
    // Predicated region
    $region9: #{residual_block_pallas.3} parent=5 // pred_check
      _
    $region10: #{residual_block_pallas.3} parent=5 // pred_check_branch
      %144 = sbr.rel (%p141) target = $region12
    $region11: #{residual_block_pallas.3} parent=5 // pred_region
      %s145 = ssub.s32 %s11, 1
      // Predicated region
      $region13: #{residual_block_pallas.3} parent=11 // pred_check
        %p146 = pneg %p58
      $region14: #{residual_block_pallas.3} parent=11 // pred_check_branch
        %148 = sbr.rel (%p146) target = $region16
      $region15: #{residual_block_pallas.3} parent=11 // pred_region
        _
      $region16: #{residual_block_pallas.3} parent=11 // pred_fallthru
        _
      // Predicated region
      $region17: #{residual_block_pallas.3} parent=11 // pred_check
        %p149 = pneg %p79
      $region18: #{residual_block_pallas.3} parent=11 // pred_check_branch
        %151 = sbr.rel (%p149) target = $region20
      $region19: #{residual_block_pallas.3} parent=11 // pred_region
        _
      $region20: #{residual_block_pallas.3} parent=11 // pred_fallthru
        _
    $region12: #{residual_block_pallas.3} parent=5 // pred_fallthru
      _
    %p152 = scmp.lt.s32.totalorder %s11, 2
    // Predicated region
    $region21: #{residual_block_pallas.3} parent=5 // pred_check
      %p153 = pneg %p152
    $region22: #{residual_block_pallas.3} parent=5 // pred_check_branch
      %155 = sbr.rel (%p153) target = $region24
    $region23: #{residual_block_pallas.3} parent=5 // pred_region
      // Predicated region
      $region25: #{residual_block_pallas.3} parent=23 // pred_check
        %p156 = pneg %p31
      $region26: #{residual_block_pallas.3} parent=23 // pred_check_branch
        %158 = sbr.rel (%p156) target = $region28
      $region27: #{residual_block_pallas.3} parent=23 // pred_region
        %s159 = smul.u32 2, %s11
        %p160 = scmp.lt.s32.totalorder %s159, 3
        %s161 = scalar_select %p160, %s159, 3
        %s162 = smul.addr %s161, 8
        %s163 = scalar_lea.vmem %s0, %s162
        %s164 = smul.u32 2, %s11
      $region28: #{residual_block_pallas.3} parent=23 // pred_fallthru
        _
    $region24: #{residual_block_pallas.3} parent=5 // pred_fallthru
      _
    %p165 = scmp.le.s32.totalorder 1, %s11
    %p166 = scmp.lt.s32.totalorder %s11, 3
    %p167 = pnand %p165, %p166
    %p168 = pneg %p167
    // Predicated region
    $region29: #{residual_block_pallas.3} parent=5 // pred_check
      _
    $region30: #{residual_block_pallas.3} parent=5 // pred_check_branch
      %170 = sbr.rel (%p167) target = $region32
    $region31: #{residual_block_pallas.3} parent=5 // pred_region
      %s171 = ssub.s32 %s11, 1
      %s172 = smul.u32 2, %s16
      %p173 = scmp.lt.s32.totalorder %s172, 3
      %s174 = scalar_select %p173, %s172, 3
      %s175 = smul.addr %s174, 8
      %s176 = scalar_lea.vmem %s0, %s175
      %p177 = pneg %p37
      %p178 = pneg %p34
      %p179 = pneg %p58
      %p180 = pneg %p55
      %p181 = pneg %p79
      %p182 = pneg %p76
      %p183 = pneg %p105
      %p184 = pneg %p102
      %s185 = smul.u32 2, %s16
      %p186 = scmp.lt.s32.totalorder %s185, 3
      %s187 = scalar_select %p186, %s185, 3
      %s188 = smul.addr %s187, 8
      %s189 = scalar_lea.vmem %s3, %s188
      %p190 = pneg %p131
      %p191 = pneg %p128
      %p192 = scmp.lt.s32.totalorder %s16, 1
      %s193 = scalar_select %p192, %s16, 1
      %s194 = smul.addr %s193, 2
      %s195 = scalar_lea.vmem %s4, %s194
      %s196 = smul.u32 2, %s16
      %p197 = scmp.lt.s32.totalorder %s196, 3
      %s198 = scalar_select %p197, %s196, 3
      %s199 = smul.addr %s198, 8
      %s200 = scalar_lea.vmem %s0, %s199
      %s201 = smul.u32 2, %s16
      %s202 = smul.u32 2, %s16
      %p203 = scmp.lt.s32.totalorder %s202, 3
      %s204 = scalar_select %p203, %s202, 3
      %s205 = smul.addr %s204, 8
      %s206 = scalar_lea.vmem %s3, %s205
      %s207 = smul.u32 2, %s16
      %p208 = scmp.lt.s32.totalorder %s16, 1
      %s209 = scalar_select %p208, %s16, 1
      %s210 = smul.addr %s209, 2
      %s211 = scalar_lea.vmem %s4, %s210
      %v212 = vld [vmem:[%s200] sm:$0xff]
      %v213 = vld [vmem:[%s200 + $0x8] sm:$0xff]
      %v214 = vlaneseq
      %v215 = vshrl.u32 %v214, 7
      %v216 = vadd.s32 %v215, 8
      %vm217 = vcmp.lt.s32.totalorder %v215, 0
      %v218 = vsub.s32 0, %v215
      %v219 = vsel %vm217, %v218, %v215
      %v220 = vshrl.u32 %v219, 4
      %v221 = vand.u32 %v219, 15
      %v222 = vsub.s32 0, %v221
      %v223 = vsel %vm217, %v222, %v221
      %vm224 = vcmp.lt.s32.totalorder %v216, 0
      %v225 = vsub.s32 0, %v216
      %v226 = vsel %vm224, %v225, %v216
      %v227 = vshrl.u32 %v226, 4
      %v228 = vand.u32 %v226, 15
      %v229 = vsub.s32 0, %v228
      %v230 = vsel %vm224, %v229, %v228
      %vm231 = vcmp.ne.s32.totalorder %v223, 0
      %vm232 = vcmp.ne.s32.totalorder %v230, 0
      %vm233 = vcmp.lt.s32.totalorder %v223, 0
      %vm234 = vcmp.lt.s32.totalorder %v230, 0
      %vm235 = vmand %vm233, %vm231
      %vm236 = vmand %vm234, %vm232
      %v237 = vadd.s32 %v223, 16
      %v238 = vadd.s32 %v230, 16
      %v239 = vsel %vm235, %v237, %v223
      %v240 = vsel %vm236, %v238, %v230
      %vm241 = vcmp.ge.s32.totalorder %v239, 1
      %vm242 = vcmp.ge.s32.totalorder %v240, 1
      %vm243 = vcmp.le.s32.totalorder %v239, 14
      %vm244 = vcmp.le.s32.totalorder %v240, 14
      %v245 = vrot.slane %v212, 7
      %v246 = vrot.slane %v213, 7
      %vm247 = vcmp.lt.s32.totalorder %v215, 1
      %v248 = vsel %vm247, %v245, %v246
      %v249 = vsel %vm247, %v246, %v245
      %v250 = vsel %vm241, 1, 0
      %v251 = vsel %vm242, 1, 0
      %vm252 = vcmp.eq.s32.totalorder %v250, 1
      %vm253 = vcmp.eq.s32.totalorder %v251, 1
      %v254 = vsel %vm252, %v249, 0.0
      %v255 = vsel %vm253, %v248, 0.0
      %v256 = vrot.slane %v212, 1
      %v257 = vrot.slane %v213, 1
      %vm258 = vcmp.lt.s32.totalorder %v215, 7
      %v259 = vsel %vm258, %v256, %v257
      %v260 = vsel %vm258, %v257, %v256
      %v261 = vsel %vm243, 1, 0
      %v262 = vsel %vm244, 1, 0
      %vm263 = vcmp.eq.s32.totalorder %v261, 1
      %vm264 = vcmp.eq.s32.totalorder %v262, 1
      %v265 = vsel %vm263, %v259, 0.0
      %v266 = vsel %vm264, %v260, 0.0
      %v267 = vpack.c.bf16 %v255, %v254
      %v268 = vpack.c.bf16 %v213, %v212
      %v269 = vpack.c.bf16 %v266, %v265
      %v270 = vld [vmem:[%s1] sm:$0xf]
      %v271 = vld [vmem:[%s1 + $0x4] sm:$0xf]
      %v272 = vld [vmem:[%s1 + $0x8] sm:$0xf]
      %v273 = vld [vmem:[%s1 + $0xc] sm:$0xf]
      %v274 = vld [vmem:[%s1 + $0x10] sm:$0xf]
      %v275 = vld [vmem:[%s1 + $0x14] sm:$0xf]
      %v276 = vld [vmem:[%s1 + $0x18] sm:$0xf]
      %v277 = vld [vmem:[%s1 + $0x1c] sm:$0xf]
      %v278 = vld [vmem:[%s1 + $0x20] sm:$0xf]
      %v279 = vld [vmem:[%s1 + $0x24] sm:$0xf]
      %v280 = vld [vmem:[%s1 + $0x28] sm:$0xf]
      %v281 = vld [vmem:[%s1 + $0x2c] sm:$0xf]
      %v282 = vld [vmem:[%s1 + $0x30] sm:$0xf]
      %v283 = vld [vmem:[%s1 + $0x34] sm:$0xf]
      %v284 = vld [vmem:[%s1 + $0x38] sm:$0xf]
      %v285 = vld [vmem:[%s1 + $0x3c] sm:$0xf]
      %v286 = vld [vmem:[%s1 + $0x40] sm:$0xf]
      %v287 = vld [vmem:[%s1 + $0x44] sm:$0xf]
      %v288 = vld [vmem:[%s1 + $0x48] sm:$0xf]
      %v289 = vld [vmem:[%s1 + $0x4c] sm:$0xf]
      %v290 = vld [vmem:[%s1 + $0x50] sm:$0xf]
      %v291 = vld [vmem:[%s1 + $0x54] sm:$0xf]
      %v292 = vld [vmem:[%s1 + $0x58] sm:$0xf]
      %v293 = vld [vmem:[%s1 + $0x5c] sm:$0xf]
      %v294 = vld [vmem:[%s1 + $0x60] sm:$0xf]
      %v295 = vld [vmem:[%s1 + $0x64] sm:$0xf]
      %v296 = vld [vmem:[%s1 + $0x68] sm:$0xf]
      %v297 = vld [vmem:[%s1 + $0x6c] sm:$0xf]
      %v298 = vld [vmem:[%s1 + $0x70] sm:$0xf]
      %v299 = vld [vmem:[%s1 + $0x74] sm:$0xf]
      %v300 = vld [vmem:[%s1 + $0x78] sm:$0xf]
      %v301 = vld [vmem:[%s1 + $0x7c] sm:$0xf]
      %v302 = vld [vmem:[%s1 + $0x80] sm:$0xf]
      %v303 = vld [vmem:[%s1 + $0x84] sm:$0xf]
      %v304 = vld [vmem:[%s1 + $0x88] sm:$0xf]
      %v305 = vld [vmem:[%s1 + $0x8c] sm:$0xf]
      %v306 = vld [vmem:[%s1 + $0x90] sm:$0xf]
      %v307 = vld [vmem:[%s1 + $0x94] sm:$0xf]
      %v308 = vld [vmem:[%s1 + $0x98] sm:$0xf]
      %v309 = vld [vmem:[%s1 + $0x9c] sm:$0xf]
      %v310 = vld [vmem:[%s1 + $0xa0] sm:$0xf]
      %v311 = vld [vmem:[%s1 + $0xa4] sm:$0xf]
      %v312 = vld [vmem:[%s1 + $0xa8] sm:$0xf]
      %v313 = vld [vmem:[%s1 + $0xac] sm:$0xf]
      %v314 = vld [vmem:[%s1 + $0xb0] sm:$0xf]
      %v315 = vld [vmem:[%s1 + $0xb4] sm:$0xf]
      %v316 = vld [vmem:[%s1 + $0xb8] sm:$0xf]
      %v317 = vld [vmem:[%s1 + $0xbc] sm:$0xf]
      %v318 = vld [vmem:[%s2] sm:$0x1]
      %v320 = vperm.slane %v318, 0
      %v370 = vunpack.c.l.b16 %v270
      %v371 = vunpack.c.l.b16 %v271
      %v372 = vunpack.c.l.b16 %v272
      %v373 = vunpack.c.l.b16 %v273
      %v374 = vunpack.c.l.b16 %v274
      %v375 = vunpack.c.l.b16 %v275
      %v376 = vunpack.c.l.b16 %v276
      %v377 = vunpack.c.l.b16 %v277
      %v378 = vunpack.c.l.b16 %v278
      %v379 = vunpack.c.l.b16 %v279
      %v380 = vunpack.c.l.b16 %v280
      %v381 = vunpack.c.l.b16 %v281
      %v382 = vunpack.c.l.b16 %v282
      %v383 = vunpack.c.l.b16 %v283
      %v384 = vunpack.c.l.b16 %v284
      %v385 = vunpack.c.l.b16 %v285
      %v386 = vunpack.c.l.b16 %v286
      %v387 = vunpack.c.l.b16 %v287
      %v388 = vunpack.c.l.b16 %v288
      %v389 = vunpack.c.l.b16 %v289
      %v390 = vunpack.c.l.b16 %v290
      %v391 = vunpack.c.l.b16 %v291
      %v392 = vunpack.c.l.b16 %v292
      %v393 = vunpack.c.l.b16 %v293
      %v394 = vunpack.c.l.b16 %v294
      %v395 = vunpack.c.l.b16 %v295
      %v396 = vunpack.c.l.b16 %v296
      %v397 = vunpack.c.l.b16 %v297
      %v398 = vunpack.c.l.b16 %v298
      %v399 = vunpack.c.l.b16 %v299
      %v400 = vunpack.c.l.b16 %v300
      %v401 = vunpack.c.l.b16 %v301
      %v402 = vunpack.c.l.b16 %v302
      %v403 = vunpack.c.l.b16 %v303
      %v404 = vunpack.c.l.b16 %v304
      %v405 = vunpack.c.l.b16 %v305
      %v406 = vunpack.c.l.b16 %v306
      %v407 = vunpack.c.l.b16 %v307
      %v408 = vunpack.c.l.b16 %v308
      %v409 = vunpack.c.l.b16 %v309
      %v410 = vunpack.c.l.b16 %v310
      %v411 = vunpack.c.l.b16 %v311
      %v412 = vunpack.c.l.b16 %v312
      %v413 = vunpack.c.l.b16 %v313
      %v414 = vunpack.c.l.b16 %v314
      %v415 = vunpack.c.l.b16 %v315
      %v416 = vunpack.c.l.b16 %v316
      %v417 = vunpack.c.l.b16 %v317
      %v418 = vpack.c.b16 %v371, %v370
      %v419 = vpack.c.b16 %v373, %v372
      %v420 = vpack.c.b16 %v375, %v374
      %v421 = vpack.c.b16 %v377, %v376
      %v422 = vpack.c.b16 %v379, %v378
      %v423 = vpack.c.b16 %v381, %v380
      %v424 = vpack.c.b16 %v383, %v382
      %v425 = vpack.c.b16 %v385, %v384
      %v426 = vpack.c.b16 %v387, %v386
      %v427 = vpack.c.b16 %v389, %v388
      %v428 = vpack.c.b16 %v391, %v390
      %v429 = vpack.c.b16 %v393, %v392
      %v430 = vpack.c.b16 %v395, %v394
      %v431 = vpack.c.b16 %v397, %v396
      %v432 = vpack.c.b16 %v399, %v398
      %v433 = vpack.c.b16 %v401, %v400
      %v434 = vpack.c.b16 %v403, %v402
      %v435 = vpack.c.b16 %v405, %v404
      %v436 = vpack.c.b16 %v407, %v406
      %v437 = vpack.c.b16 %v409, %v408
      %v438 = vpack.c.b16 %v411, %v410
      %v439 = vpack.c.b16 %v413, %v412
      %v440 = vpack.c.b16 %v415, %v414
      %v441 = vpack.c.b16 %v417, %v416
      %466 = vmatpush.bf16.msra.mxu0 %v425
      %467 = vmatpush.bf16.msra.mxu0 %v424
      %468 = vmatpush.bf16.msra.mxu0 %v423
      %469 = vmatpush.bf16.msra.mxu0 %v422
      %470 = vmatpush.bf16.msra.mxu0 %v421
      %471 = vmatpush.bf16.msra.mxu0 %v420
      %472 = vmatpush.bf16.msra.mxu0 %v419
      %473 = vmatpush.bf16.msra.mxu0 %v418
      %474 = vmatmul.bf16.gmra.mxu0 %v267
      %v475 = vpop.f32.mrf.mxu0
      %v476 = vadd.f32 %v320, %v475
      %v477 = vpop.f32.mrf.mxu0
      %v478 = vadd.f32 %v320, %v477
      %479 = vdwg.mxu0
      %480 = vmatpush.bf16.msra.mxu0 %v433
      %481 = vmatpush.bf16.msra.mxu0 %v432
      %482 = vmatpush.bf16.msra.mxu0 %v431
      %483 = vmatpush.bf16.msra.mxu0 %v430
      %484 = vmatpush.bf16.msra.mxu0 %v429
      %485 = vmatpush.bf16.msra.mxu0 %v428
      %486 = vmatpush.bf16.msra.mxu0 %v427
      %487 = vmatpush.bf16.msra.mxu0 %v426
      %488 = vmatmul.bf16.gmra.mxu0 %v268
      %v489 = vpop.f32.mrf.mxu0
      %v490 = vadd.f32 %v476, %v489
      %v491 = vpop.f32.mrf.mxu0
      %v492 = vadd.f32 %v478, %v491
      %493 = vdwg.mxu0
      %494 = vmatpush.bf16.msra.mxu0 %v441
      %495 = vmatpush.bf16.msra.mxu0 %v440
      %496 = vmatpush.bf16.msra.mxu0 %v439
      %497 = vmatpush.bf16.msra.mxu0 %v438
      %498 = vmatpush.bf16.msra.mxu0 %v437
      %499 = vmatpush.bf16.msra.mxu0 %v436
      %500 = vmatpush.bf16.msra.mxu0 %v435
      %501 = vmatpush.bf16.msra.mxu0 %v434
      %502 = vmatmul.bf16.gmra.mxu0 %v269
      %v503 = vpop.f32.mrf.mxu0
      %v504 = vadd.f32 %v490, %v503
      %v505 = vpop.f32.mrf.mxu0
      %v506 = vadd.f32 %v492, %v505
      %507 = vdwg.mxu0
      %508 = vst [vmem:[%s206] sm:$0xff] %v504
      %509 = vst [vmem:[%s206 + $0x8] sm:$0xff] %v506
      %v510 = vadd.f32 %v504, %v506
      %v511 = vrot.slane %v510, 4
      %v512 = vadd.f32 %v510, %v511
      %v513 = vrot.slane %v512, 2
      %v514 = vadd.f32 %v512, %v513
      %v515 = vrot.slane %v514, 1
      %v516 = vadd.f32 %v514, %v515
      %v517 = vmul.f32 %v504, %v504
      %v518 = vmul.f32 %v506, %v506
      %v519 = vadd.f32 %v517, %v518
      %v520 = vrot.slane %v519, 4
      %v521 = vadd.f32 %v519, %v520
      %v522 = vrot.slane %v521, 2
      %v523 = vadd.f32 %v521, %v522
      %v524 = vrot.slane %v523, 1
      %v525 = vadd.f32 %v523, %v524
      %vm526 = vcmask 1040384
      %v527 = vsel %vm526, %v516, %v525
      %528 = vst [vmem:[%s211] sm:$0x3] %v527
      %s529 = smul.u32 2, %s16
      %p530 = scmp.lt.s32.totalorder %s529, 3
      %s531 = scalar_select %p530, %s529, 3
      %s532 = smul.addr %s531, 8
      %s533 = scalar_lea.vmem %s3, %s532
      %p534 = scmp.lt.s32.totalorder %s16, 1
      %s535 = scalar_select %p534, %s16, 1
      %s536 = smul.addr %s535, 2
      %s537 = scalar_lea.vmem %s4, %s536
      // Predicated region
      $region33: #{residual_block_pallas.3} parent=31 // pred_check
        %p538 = pneg %p102
      $region34: #{residual_block_pallas.3} parent=31 // pred_check_branch
        %540 = sbr.rel (%p538) target = $region36
      $region35: #{residual_block_pallas.3} parent=31 // pred_region
        %s541 = smul.u32 2, %s16
      $region36: #{residual_block_pallas.3} parent=31 // pred_fallthru
        _
      // Predicated region
      $region37: #{residual_block_pallas.3} parent=31 // pred_check
        %p542 = pneg %p128
      $region38: #{residual_block_pallas.3} parent=31 // pred_check_branch
        %544 = sbr.rel (%p542) target = $region40
      $region39: #{residual_block_pallas.3} parent=31 // pred_region
        _
      $region40: #{residual_block_pallas.3} parent=31 // pred_fallthru
        _
    $region32: #{residual_block_pallas.3} parent=5 // pred_fallthru
      _
    %p545 = scmp.le.s32.totalorder 2, %s11
    // Predicated region
    $region41: #{residual_block_pallas.3} parent=5 // pred_check
      %p546 = pneg %p545
    $region42: #{residual_block_pallas.3} parent=5 // pred_check_branch
      %548 = sbr.rel (%p546) target = $region44
    $region43: #{residual_block_pallas.3} parent=5 // pred_region
      %s549 = ssub.s32 %s11, 2
      // Predicated region
      $region45: #{residual_block_pallas.3} parent=43 // pred_check
        %p550 = pneg %p108
      $region46: #{residual_block_pallas.3} parent=43 // pred_check_branch
        %552 = sbr.rel (%p550) target = $region48
      $region47: #{residual_block_pallas.3} parent=43 // pred_region
        %s553 = smul.u32 2, %s17
        %p554 = scmp.lt.s32.totalorder %s553, 3
        %s555 = scalar_select %p554, %s553, 3
        %s556 = smul.addr %s555, 8
        %s557 = scalar_lea.vmem %s3, %s556
      $region48: #{residual_block_pallas.3} parent=43 // pred_fallthru
        _
      // Predicated region
      $region49: #{residual_block_pallas.3} parent=43 // pred_check
        %p558 = pneg %p134
      $region50: #{residual_block_pallas.3} parent=43 // pred_check_branch
        %560 = sbr.rel (%p558) target = $region52
      $region51: #{residual_block_pallas.3} parent=43 // pred_region
        %p561 = scmp.lt.s32.totalorder %s17, 1
        %s562 = scalar_select %p561, %s17, 1
        %s563 = smul.addr %s562, 2
        %s564 = scalar_lea.vmem %s4, %s563
      $region52: #{residual_block_pallas.3} parent=43 // pred_fallthru
        _
    $region44: #{residual_block_pallas.3} parent=5 // pred_fallthru
      _
  $region6: #{residual_block_pallas.3} parent=0 // loop_footer
    %s15 = sadd.s32 1, %s11
  $region7: #{residual_block_pallas.3} parent=0 // loop_footer_branch
    %10 = sbr.rel target = $region3
  $region8: #{residual_block_pallas.3} parent=0 // loop_exit
    _

// kernel: residual_block_pallas.5
$region0: #{residual_block_pallas.5}
  #allocation0 [shape = 'u32[]', space=smem, size = 0x4, offset = 0x4, fixed_abs, tag = 'smem constant byte address 0x4 - core index']
  #allocation1 [shape = 'u32[72,128]{1,0:T(1,128)}', space=vmem, size = 0x9000, scoped, tag = 'internal scratch']
  %s0 = inlined_call_operand.vmem [shape: f32[32,128], index: 0, kind: input, shape index: {}, may-alias: {0,4}]
  %s1 = inlined_call_operand.vmem [shape: f32[32,128], index: 1, kind: input, shape index: {}]
  %s2 = inlined_call_operand.vmem [shape: f32[1,128], index: 2, kind: input, shape index: {}]
  %s3 = inlined_call_operand.vmem [shape: f32[1,128], index: 3, kind: input, shape index: {}]
  %s4 = inlined_call_operand.vmem [shape: f32[32,128], index: 4, kind: output, shape index: {}, may-alias: {0,4}]
  %s5 = sld [smem:[#allocation0]]
  $region26: #{residual_block_pallas.5} parent=0
    _
  %s7 = ssub.s32 1, %s5
  %s8 = scalar_select 0, %s7, %s5
  // Predicated region
  $region2: #{residual_block_pallas.5} parent=0 // pred_check
    _
  $region3: #{residual_block_pallas.5} parent=0 // pred_check_branch
    %10 = sbr.rel (0) target = $region5
  $region4: #{residual_block_pallas.5} parent=0 // pred_region
    _
  $region5: #{residual_block_pallas.5} parent=0 // pred_fallthru
    _
  // Predicated region
  $region6: #{residual_block_pallas.5} parent=0 // pred_check
    _
  $region7: #{residual_block_pallas.5} parent=0 // pred_check_branch
    %12 = sbr.rel (0) target = $region9
  $region8: #{residual_block_pallas.5} parent=0 // pred_region
    _
  $region9: #{residual_block_pallas.5} parent=0 // pred_fallthru
    _
  // Predicated region
  $region10: #{residual_block_pallas.5} parent=0 // pred_check
    _
  $region11: #{residual_block_pallas.5} parent=0 // pred_check_branch
    %14 = sbr.rel (0) target = $region13
  $region12: #{residual_block_pallas.5} parent=0 // pred_region
    _
  $region13: #{residual_block_pallas.5} parent=0 // pred_fallthru
    _
  // Predicated region
  $region14: #{residual_block_pallas.5} parent=0 // pred_check
    _
  $region15: #{residual_block_pallas.5} parent=0 // pred_check_branch
    %16 = sbr.rel (0) target = $region17
  $region16: #{residual_block_pallas.5} parent=0 // pred_region
    _
  $region17: #{residual_block_pallas.5} parent=0 // pred_fallthru
    _
  %v17 = vld [vmem:[%s0] sm:$0xff]
  %v18 = vld [vmem:[%s0 + $0x8] sm:$0xff]
  %v19 = vld [vmem:[%s0 + $0x10] sm:$0xff]
  %v20 = vld [vmem:[%s0 + $0x18] sm:$0xff]
  %v21 = vld [vmem:[%s2] sm:$0x1]
  %v23 = vperm.slane %v21, 0
  %v25 = vmul.f32 %v17, %v23
  %v26 = vmul.f32 %v18, %v23
  %v27 = vmul.f32 %v19, %v23
  %v28 = vmul.f32 %v20, %v23
  %v29 = vld [vmem:[%s3] sm:$0x1]
  %v31 = vperm.slane %v29, 0
  %v33 = vadd.f32 %v25, %v31
  %v34 = vadd.f32 %v26, %v31
  %v35 = vadd.f32 %v27, %v31
  %v36 = vadd.f32 %v28, %v31
  %v37 = vld [vmem:[%s1] sm:$0xff]
  %v38 = vld [vmem:[%s1 + $0x8] sm:$0xff]
  %v39 = vld [vmem:[%s1 + $0x10] sm:$0xff]
  %v40 = vld [vmem:[%s1 + $0x18] sm:$0xff]
  %v41 = vadd.f32 %v33, %v37
  %v42 = vadd.f32 %v34, %v38
  %v43 = vadd.f32 %v35, %v39
  %v44 = vadd.f32 %v36, %v40
  %v45 = vmax.f32 %v41, 0.0
  %v46 = vmax.f32 %v42, 0.0
  %v47 = vmax.f32 %v43, 0.0
  %v48 = vmax.f32 %v44, 0.0
  %49 = vst [vmem:[%s4] sm:$0xff] %v45
  %50 = vst [vmem:[%s4 + $0x8] sm:$0xff] %v46
  %51 = vst [vmem:[%s4 + $0x10] sm:$0xff] %v47
  %52 = vst [vmem:[%s4 + $0x18] sm:$0xff] %v48
  // Predicated region
  $region18: #{residual_block_pallas.5} parent=0 // pred_check
    _
  $region19: #{residual_block_pallas.5} parent=0 // pred_check_branch
    %54 = sbr.rel (0) target = $region21
  $region20: #{residual_block_pallas.5} parent=0 // pred_region
    _
  $region21: #{residual_block_pallas.5} parent=0 // pred_fallthru
    _
  // Predicated region
  $region22: #{residual_block_pallas.5} parent=0 // pred_check
    _
  $region23: #{residual_block_pallas.5} parent=0 // pred_check_branch
    %56 = sbr.rel (0) target = $region25
  $region24: #{residual_block_pallas.5} parent=0 // pred_region
    _
  $region25: #{residual_block_pallas.5} parent=0 // pred_fallthru
    _

// kernel: residual_block_pallas.4
$region0: #{residual_block_pallas.4}
  #allocation0 [shape = 'u32[]', space=smem, size = 0x4, offset = 0x4, fixed_abs, tag = 'smem constant byte address 0x4 - core index']
  #allocation1 [shape = 'u32[72,128]{1,0:T(1,128)}', space=vmem, size = 0x9000, scoped, tag = 'internal scratch']
  %s0 = inlined_call_operand.vmem [shape: f32[32,128], index: 0, kind: input, shape index: {}]
  %s1 = inlined_call_operand.vmem [shape: f32[1,128], index: 1, kind: input, shape index: {}]
  %s2 = inlined_call_operand.vmem [shape: f32[1,128], index: 2, kind: input, shape index: {}]
  %s3 = inlined_call_operand.vmem [shape: bf16[384,128], index: 3, kind: input, shape index: {}]
  %s4 = inlined_call_operand.vmem [shape: f32[1,128], index: 4, kind: input, shape index: {}]
  %s5 = inlined_call_operand.vmem [shape: f32[32,128], index: 5, kind: output, shape index: {0}]
  %s6 = inlined_call_operand.vmem [shape: f32[2,2,128], index: 6, kind: output, shape index: {1}]
  %7 = xla_tuple %s5, %s6
  %s8 = sld [smem:[#allocation0]]
  $region61: #{residual_block_pallas.4} parent=0
    _
  %s10 = ssub.s32 1, %s8
  %s11 = scalar_select 0, %s10, %s8
  loop: start=0, step=1, limit=4
  $region2: #{residual_block_pallas.4} parent=0 // loop_pre_header
    _
  $region3: #{residual_block_pallas.4} parent=0 // loop_header
    %s13 = sphi 0, %s17
    %p14 = scmp.ge.s32.totalorder %s13, 4
    %s23 = sphi 0, %s25
    %s26 = sphi 0, %s23
    %s27 = sphi 0, %s26
    %s43 = sphi 0, %s27
    %s47 = sphi 0, %s47
    %s49 = sphi 0, %s47
    %s50 = sphi 0, %s49
    %s64 = sphi 0, %s50
    %s68 = sphi 0, %s68
    %s70 = sphi 0, %s68
    %s71 = sphi 0, %s70
    %s85 = sphi 0, %s71
    %s89 = sphi 0, %s89
    %s91 = sphi 0, %s89
    %s92 = sphi 0, %s91
    %s106 = sphi 0, %s92
    %s110 = sphi 0, %s110
    %s112 = sphi 0, %s110
    %s113 = sphi 0, %s112
    %s127 = sphi 0, %s113
    %s133 = sphi 0, %s135
    %s136 = sphi 0, %s133
    %s137 = sphi 0, %s136
    %s153 = sphi 0, %s137
    %s159 = sphi 0, %s161
    %s162 = sphi 0, %s159
    %s163 = sphi 0, %s162
    %s179 = sphi 0, %s163
  $region4: #{residual_block_pallas.4} parent=0 // loop_header_branch
    %16 = sbr.rel (%p14) target = $region8
  $region5: #{residual_block_pallas.4} parent=0 // loop_body
    %s18 = ssub.s32 %s13, 1
    %s19 = ssub.s32 %s13, 2
    %s20 = sadd.s32 %s13, 1
    %s21 = ssub.s32 %s13, %s20
    %p22 = scmp.eq.s32.totalorder %s21, 0
    %s24 = sadd.s32 %s23, 1
    %s25 = scalar_select %p22, %s23, %s24
    %p28 = pneg %p22
    %p29 = scmp.eq.s32.totalorder %s13, 1
    %p30 = por %p28, %p29
    %p31 = scmp.ne.s32.totalorder %s23, %s26
    %p32 = scmp.eq.s32.totalorder %s13, 0
    %p33 = por %p31, %p32
    %p34 = scmp.ne.s32.totalorder %s23, %s26
    %p35 = scmp.eq.s32.totalorder %s18, 1
    %p36 = por %p34, %p35
    %p37 = scmp.ne.s32.totalorder %s26, %s27
    %p38 = scmp.eq.s32.totalorder %s18, 0
    %p39 = por %p37, %p38
    %p40 = scmp.ne.s32.totalorder %s26, %s27
    %p41 = scmp.eq.s32.totalorder %s19, 1
    %p42 = por %p40, %p41
    %p44 = scmp.ne.s32.totalorder %s27, %s43
    %p45 = scmp.eq.s32.totalorder %s19, 0
    %p46 = por %p44, %p45
    %s48 = sadd.s32 %s47, 1
    %p51 = scmp.eq.s32.totalorder %s13, 1
    %p52 = scmp.ne.s32.totalorder %s47, %s49
    %p53 = scmp.eq.s32.totalorder %s13, 0
    %p54 = por %p52, %p53
    %p55 = scmp.ne.s32.totalorder %s47, %s49
    %p56 = scmp.eq.s32.totalorder %s18, 1
    %p57 = por %p55, %p56
    %p58 = scmp.ne.s32.totalorder %s49, %s50
    %p59 = scmp.eq.s32.totalorder %s18, 0
    %p60 = por %p58, %p59
    %p61 = scmp.ne.s32.totalorder %s49, %s50
    %p62 = scmp.eq.s32.totalorder %s19, 1
    %p63 = por %p61, %p62
    %p65 = scmp.ne.s32.totalorder %s50, %s64
    %p66 = scmp.eq.s32.totalorder %s19, 0
    %p67 = por %p65, %p66
    %s69 = sadd.s32 %s68, 1
    %p72 = scmp.eq.s32.totalorder %s13, 1
    %p73 = scmp.ne.s32.totalorder %s68, %s70
    %p74 = scmp.eq.s32.totalorder %s13, 0
    %p75 = por %p73, %p74
    %p76 = scmp.ne.s32.totalorder %s68, %s70
    %p77 = scmp.eq.s32.totalorder %s18, 1
    %p78 = por %p76, %p77
    %p79 = scmp.ne.s32.totalorder %s70, %s71
    %p80 = scmp.eq.s32.totalorder %s18, 0
    %p81 = por %p79, %p80
    %p82 = scmp.ne.s32.totalorder %s70, %s71
    %p83 = scmp.eq.s32.totalorder %s19, 1
    %p84 = por %p82, %p83
    %p86 = scmp.ne.s32.totalorder %s71, %s85
    %p87 = scmp.eq.s32.totalorder %s19, 0
    %p88 = por %p86, %p87
    %s90 = sadd.s32 %s89, 1
    %p93 = scmp.eq.s32.totalorder %s13, 1
    %p94 = scmp.ne.s32.totalorder %s89, %s91
    %p95 = scmp.eq.s32.totalorder %s13, 0
    %p96 = por %p94, %p95
    %p97 = scmp.ne.s32.totalorder %s89, %s91
    %p98 = scmp.eq.s32.totalorder %s18, 1
    %p99 = por %p97, %p98
    %p100 = scmp.ne.s32.totalorder %s91, %s92
    %p101 = scmp.eq.s32.totalorder %s18, 0
    %p102 = por %p100, %p101
    %p103 = scmp.ne.s32.totalorder %s91, %s92
    %p104 = scmp.eq.s32.totalorder %s19, 1
    %p105 = por %p103, %p104
    %p107 = scmp.ne.s32.totalorder %s92, %s106
    %p108 = scmp.eq.s32.totalorder %s19, 0
    %p109 = por %p107, %p108
    %s111 = sadd.s32 %s110, 1
    %p114 = scmp.eq.s32.totalorder %s13, 1
    %p115 = scmp.ne.s32.totalorder %s110, %s112
    %p116 = scmp.eq.s32.totalorder %s13, 0
    %p117 = por %p115, %p116
    %p118 = scmp.ne.s32.totalorder %s110, %s112
    %p119 = scmp.eq.s32.totalorder %s18, 1
    %p120 = por %p118, %p119
    %p121 = scmp.ne.s32.totalorder %s112, %s113
    %p122 = scmp.eq.s32.totalorder %s18, 0
    %p123 = por %p121, %p122
    %p124 = scmp.ne.s32.totalorder %s112, %s113
    %p125 = scmp.eq.s32.totalorder %s19, 1
    %p126 = por %p124, %p125
    %p128 = scmp.ne.s32.totalorder %s113, %s127
    %p129 = scmp.eq.s32.totalorder %s19, 0
    %p130 = por %p128, %p129
    %s131 = ssub.s32 %s13, %s20
    %p132 = scmp.eq.s32.totalorder %s131, 0
    %s134 = sadd.s32 %s133, 1
    %s135 = scalar_select %p132, %s133, %s134
    %p138 = pneg %p132
    %p139 = scmp.eq.s32.totalorder %s13, 1
    %p140 = por %p138, %p139
    %p141 = scmp.ne.s32.totalorder %s133, %s136
    %p142 = scmp.eq.s32.totalorder %s13, 0
    %p143 = por %p141, %p142
    %p144 = scmp.ne.s32.totalorder %s133, %s136
    %p145 = scmp.eq.s32.totalorder %s18, 1
    %p146 = por %p144, %p145
    %p147 = scmp.ne.s32.totalorder %s136, %s137
    %p148 = scmp.eq.s32.totalorder %s18, 0
    %p149 = por %p147, %p148
    %p150 = scmp.ne.s32.totalorder %s136, %s137
    %p151 = scmp.eq.s32.totalorder %s19, 1
    %p152 = por %p150, %p151
    %p154 = scmp.ne.s32.totalorder %s137, %s153
    %p155 = scmp.eq.s32.totalorder %s19, 0
    %p156 = por %p154, %p155
    %s157 = ssub.s32 %s13, %s20
    %p158 = scmp.eq.s32.totalorder %s157, 0
    %s160 = sadd.s32 %s159, 1
    %s161 = scalar_select %p158, %s159, %s160
    %p164 = pneg %p158
    %p165 = scmp.eq.s32.totalorder %s13, 1
    %p166 = por %p164, %p165
    %p167 = scmp.ne.s32.totalorder %s159, %s162
    %p168 = scmp.eq.s32.totalorder %s13, 0
    %p169 = por %p167, %p168
    %p170 = scmp.ne.s32.totalorder %s159, %s162
    %p171 = scmp.eq.s32.totalorder %s18, 1
    %p172 = por %p170, %p171
    %p173 = scmp.ne.s32.totalorder %s162, %s163
    %p174 = scmp.eq.s32.totalorder %s18, 0
    %p175 = por %p173, %p174
    %p176 = scmp.ne.s32.totalorder %s162, %s163
    %p177 = scmp.eq.s32.totalorder %s19, 1
    %p178 = por %p176, %p177
    %p180 = scmp.ne.s32.totalorder %s163, %s179
    %p181 = scmp.eq.s32.totalorder %s19, 0
    %p182 = por %p180, %p181
    %p183 = scmp.le.s32.totalorder 1, %s13
    %p184 = scmp.lt.s32.totalorder %s13, 3
    %p185 = pnand %p183, %p184
    %p186 = pneg %p185
    // Predicated region
    $region9: #{residual_block_pallas.4} parent=5 // pred_check
      _
    $region10: #{residual_block_pallas.4} parent=5 // pred_check_branch
      %188 = sbr.rel (%p185) target = $region12
    $region11: #{residual_block_pallas.4} parent=5 // pred_region
      %s189 = ssub.s32 %s13, 1
      // Predicated region
      $region13: #{residual_block_pallas.4} parent=11 // pred_check
        %p190 = pneg %p60
      $region14: #{residual_block_pallas.4} parent=11 // pred_check_branch
        %192 = sbr.rel (%p190) target = $region16
      $region15: #{residual_block_pallas.4} parent=11 // pred_region
        _
      $region16: #{residual_block_pallas.4} parent=11 // pred_fallthru
        _
      // Predicated region
      $region17: #{residual_block_pallas.4} parent=11 // pred_check
        %p193 = pneg %p81
      $region18: #{residual_block_pallas.4} parent=11 // pred_check_branch
        %195 = sbr.rel (%p193) target = $region20
      $region19: #{residual_block_pallas.4} parent=11 // pred_region
        _
      $region20: #{residual_block_pallas.4} parent=11 // pred_fallthru
        _
      // Predicated region
      $region21: #{residual_block_pallas.4} parent=11 // pred_check
        %p196 = pneg %p102
      $region22: #{residual_block_pallas.4} parent=11 // pred_check_branch
        %198 = sbr.rel (%p196) target = $region24
      $region23: #{residual_block_pallas.4} parent=11 // pred_region
        _
      $region24: #{residual_block_pallas.4} parent=11 // pred_fallthru
        _
      // Predicated region
      $region25: #{residual_block_pallas.4} parent=11 // pred_check
        %p199 = pneg %p123
      $region26: #{residual_block_pallas.4} parent=11 // pred_check_branch
        %201 = sbr.rel (%p199) target = $region28
      $region27: #{residual_block_pallas.4} parent=11 // pred_region
        _
      $region28: #{residual_block_pallas.4} parent=11 // pred_fallthru
        _
    $region12: #{residual_block_pallas.4} parent=5 // pred_fallthru
      _
    %p202 = scmp.lt.s32.totalorder %s13, 2
    // Predicated region
    $region29: #{residual_block_pallas.4} parent=5 // pred_check
      %p203 = pneg %p202
    $region30: #{residual_block_pallas.4} parent=5 // pred_check_branch
      %205 = sbr.rel (%p203) target = $region32
    $region31: #{residual_block_pallas.4} parent=5 // pred_region
      // Predicated region
      $region33: #{residual_block_pallas.4} parent=31 // pred_check
        %p206 = pneg %p33
      $region34: #{residual_block_pallas.4} parent=31 // pred_check_branch
        %208 = sbr.rel (%p206) target = $region36
      $region35: #{residual_block_pallas.4} parent=31 // pred_region
        %s209 = smul.u32 2, %s13
        %p210 = scmp.lt.s32.totalorder %s209, 3
        %s211 = scalar_select %p210, %s209, 3
        %s212 = smul.addr %s211, 8
        %s213 = scalar_lea.vmem %s0, %s212
        %s214 = smul.u32 2, %s13
      $region36: #{residual_block_pallas.4} parent=31 // pred_fallthru
        _
    $region32: #{residual_block_pallas.4} parent=5 // pred_fallthru
      _
    %p215 = scmp.le.s32.totalorder 1, %s13
    %p216 = scmp.lt.s32.totalorder %s13, 3
    %p217 = pnand %p215, %p216
    %p218 = pneg %p217
    // Predicated region
    $region37: #{residual_block_pallas.4} parent=5 // pred_check
      _
    $region38: #{residual_block_pallas.4} parent=5 // pred_check_branch
      %220 = sbr.rel (%p217) target = $region40
    $region39: #{residual_block_pallas.4} parent=5 // pred_region
      %s221 = ssub.s32 %s13, 1
      %s222 = smul.u32 2, %s18
      %p223 = scmp.lt.s32.totalorder %s222, 3
      %s224 = scalar_select %p223, %s222, 3
      %s225 = smul.addr %s224, 8
      %s226 = scalar_lea.vmem %s0, %s225
      %p227 = pneg %p39
      %p228 = pneg %p36
      %p229 = pneg %p60
      %p230 = pneg %p57
      %p231 = pneg %p81
      %p232 = pneg %p78
      %p233 = pneg %p102
      %p234 = pneg %p99
      %p235 = pneg %p123
      %p236 = pneg %p120
      %p237 = pneg %p149
      %p238 = pneg %p146
      %s239 = smul.u32 2, %s18
      %p240 = scmp.lt.s32.totalorder %s239, 3
      %s241 = scalar_select %p240, %s239, 3
      %s242 = smul.addr %s241, 8
      %s243 = scalar_lea.vmem %s5, %s242
      %p244 = pneg %p175
      %p245 = pneg %p172
      %p246 = scmp.lt.s32.totalorder %s18, 1
      %s247 = scalar_select %p246, %s18, 1
      %s248 = smul.addr %s247, 2
      %s249 = scalar_lea.vmem %s6, %s248
      %s250 = smul.u32 2, %s18
      %p251 = scmp.lt.s32.totalorder %s250, 3
      %s252 = scalar_select %p251, %s250, 3
      %s253 = smul.addr %s252, 8
      %s254 = scalar_lea.vmem %s0, %s253
      %s255 = smul.u32 2, %s18
      %s256 = smul.u32 2, %s18
      %p257 = scmp.lt.s32.totalorder %s256, 3
      %s258 = scalar_select %p257, %s256, 3
      %s259 = smul.addr %s258, 8
      %s260 = scalar_lea.vmem %s5, %s259
      %s261 = smul.u32 2, %s18
      %p262 = scmp.lt.s32.totalorder %s18, 1
      %s263 = scalar_select %p262, %s18, 1
      %s264 = smul.addr %s263, 2
      %s265 = scalar_lea.vmem %s6, %s264
      %v266 = vld [vmem:[%s254] sm:$0xff]
      %v267 = vld [vmem:[%s254 + $0x8] sm:$0xff]
      %v268 = vld [vmem:[%s1] sm:$0x1]
      %v270 = vperm.slane %v268, 0
      %v272 = vmul.f32 %v266, %v270
      %v273 = vmul.f32 %v267, %v270
      %v274 = vld [vmem:[%s2] sm:$0x1]
      %v276 = vperm.slane %v274, 0
      %v278 = vadd.f32 %v272, %v276
      %v279 = vadd.f32 %v273, %v276
      %v280 = vmax.f32 %v278, 0.0
      %v281 = vmax.f32 %v279, 0.0
      %v282 = vlaneseq
      %v283 = vshrl.u32 %v282, 7
      %v284 = vadd.s32 %v283, 8
      %vm285 = vcmp.lt.s32.totalorder %v283, 0
      %v286 = vsub.s32 0, %v283
      %v287 = vsel %vm285, %v286, %v283
      %v288 = vshrl.u32 %v287, 4
      %v289 = vand.u32 %v287, 15
      %v290 = vsub.s32 0, %v289
      %v291 = vsel %vm285, %v290, %v289
      %vm292 = vcmp.lt.s32.totalorder %v284, 0
      %v293 = vsub.s32 0, %v284
      %v294 = vsel %vm292, %v293, %v284
      %v295 = vshrl.u32 %v294, 4
      %v296 = vand.u32 %v294, 15
      %v297 = vsub.s32 0, %v296
      %v298 = vsel %vm292, %v297, %v296
      %vm299 = vcmp.ne.s32.totalorder %v291, 0
      %vm300 = vcmp.ne.s32.totalorder %v298, 0
      %vm301 = vcmp.lt.s32.totalorder %v291, 0
      %vm302 = vcmp.lt.s32.totalorder %v298, 0
      %vm303 = vmand %vm301, %vm299
      %vm304 = vmand %vm302, %vm300
      %v305 = vadd.s32 %v291, 16
      %v306 = vadd.s32 %v298, 16
      %v307 = vsel %vm303, %v305, %v291
      %v308 = vsel %vm304, %v306, %v298
      %vm309 = vcmp.ge.s32.totalorder %v307, 1
      %vm310 = vcmp.ge.s32.totalorder %v308, 1
      %vm311 = vcmp.le.s32.totalorder %v307, 14
      %vm312 = vcmp.le.s32.totalorder %v308, 14
      %v313 = vrot.slane %v280, 7
      %v314 = vrot.slane %v281, 7
      %vm315 = vcmp.lt.s32.totalorder %v283, 1
      %v316 = vsel %vm315, %v313, %v314
      %v317 = vsel %vm315, %v314, %v313
      %v318 = vsel %vm309, 1, 0
      %v319 = vsel %vm310, 1, 0
      %vm320 = vcmp.eq.s32.totalorder %v318, 1
      %vm321 = vcmp.eq.s32.totalorder %v319, 1
      %v322 = vsel %vm320, %v317, 0.0
      %v323 = vsel %vm321, %v316, 0.0
      %v324 = vrot.slane %v280, 1
      %v325 = vrot.slane %v281, 1
      %vm326 = vcmp.lt.s32.totalorder %v283, 7
      %v327 = vsel %vm326, %v324, %v325
      %v328 = vsel %vm326, %v325, %v324
      %v329 = vsel %vm311, 1, 0
      %v330 = vsel %vm312, 1, 0
      %vm331 = vcmp.eq.s32.totalorder %v329, 1
      %vm332 = vcmp.eq.s32.totalorder %v330, 1
      %v333 = vsel %vm331, %v327, 0.0
      %v334 = vsel %vm332, %v328, 0.0
      %v335 = vpack.c.bf16 %v323, %v322
      %v336 = vpack.c.bf16 %v281, %v280
      %v337 = vpack.c.bf16 %v334, %v333
      %v338 = vld [vmem:[%s3] sm:$0xf]
      %v339 = vld [vmem:[%s3 + $0x4] sm:$0xf]
      %v340 = vld [vmem:[%s3 + $0x8] sm:$0xf]
      %v341 = vld [vmem:[%s3 + $0xc] sm:$0xf]
      %v342 = vld [vmem:[%s3 + $0x10] sm:$0xf]
      %v343 = vld [vmem:[%s3 + $0x14] sm:$0xf]
      %v344 = vld [vmem:[%s3 + $0x18] sm:$0xf]
      %v345 = vld [vmem:[%s3 + $0x1c] sm:$0xf]
      %v346 = vld [vmem:[%s3 + $0x20] sm:$0xf]
      %v347 = vld [vmem:[%s3 + $0x24] sm:$0xf]
      %v348 = vld [vmem:[%s3 + $0x28] sm:$0xf]
      %v349 = vld [vmem:[%s3 + $0x2c] sm:$0xf]
      %v350 = vld [vmem:[%s3 + $0x30] sm:$0xf]
      %v351 = vld [vmem:[%s3 + $0x34] sm:$0xf]
      %v352 = vld [vmem:[%s3 + $0x38] sm:$0xf]
      %v353 = vld [vmem:[%s3 + $0x3c] sm:$0xf]
      %v354 = vld [vmem:[%s3 + $0x40] sm:$0xf]
      %v355 = vld [vmem:[%s3 + $0x44] sm:$0xf]
      %v356 = vld [vmem:[%s3 + $0x48] sm:$0xf]
      %v357 = vld [vmem:[%s3 + $0x4c] sm:$0xf]
      %v358 = vld [vmem:[%s3 + $0x50] sm:$0xf]
      %v359 = vld [vmem:[%s3 + $0x54] sm:$0xf]
      %v360 = vld [vmem:[%s3 + $0x58] sm:$0xf]
      %v361 = vld [vmem:[%s3 + $0x5c] sm:$0xf]
      %v362 = vld [vmem:[%s3 + $0x60] sm:$0xf]
      %v363 = vld [vmem:[%s3 + $0x64] sm:$0xf]
      %v364 = vld [vmem:[%s3 + $0x68] sm:$0xf]
      %v365 = vld [vmem:[%s3 + $0x6c] sm:$0xf]
      %v366 = vld [vmem:[%s3 + $0x70] sm:$0xf]
      %v367 = vld [vmem:[%s3 + $0x74] sm:$0xf]
      %v368 = vld [vmem:[%s3 + $0x78] sm:$0xf]
      %v369 = vld [vmem:[%s3 + $0x7c] sm:$0xf]
      %v370 = vld [vmem:[%s3 + $0x80] sm:$0xf]
      %v371 = vld [vmem:[%s3 + $0x84] sm:$0xf]
      %v372 = vld [vmem:[%s3 + $0x88] sm:$0xf]
      %v373 = vld [vmem:[%s3 + $0x8c] sm:$0xf]
      %v374 = vld [vmem:[%s3 + $0x90] sm:$0xf]
      %v375 = vld [vmem:[%s3 + $0x94] sm:$0xf]
      %v376 = vld [vmem:[%s3 + $0x98] sm:$0xf]
      %v377 = vld [vmem:[%s3 + $0x9c] sm:$0xf]
      %v378 = vld [vmem:[%s3 + $0xa0] sm:$0xf]
      %v379 = vld [vmem:[%s3 + $0xa4] sm:$0xf]
      %v380 = vld [vmem:[%s3 + $0xa8] sm:$0xf]
      %v381 = vld [vmem:[%s3 + $0xac] sm:$0xf]
      %v382 = vld [vmem:[%s3 + $0xb0] sm:$0xf]
      %v383 = vld [vmem:[%s3 + $0xb4] sm:$0xf]
      %v384 = vld [vmem:[%s3 + $0xb8] sm:$0xf]
      %v385 = vld [vmem:[%s3 + $0xbc] sm:$0xf]
      %v386 = vld [vmem:[%s4] sm:$0x1]
      %v388 = vperm.slane %v386, 0
      %v438 = vunpack.c.l.b16 %v338
      %v439 = vunpack.c.l.b16 %v339
      %v440 = vunpack.c.l.b16 %v340
      %v441 = vunpack.c.l.b16 %v341
      %v442 = vunpack.c.l.b16 %v342
      %v443 = vunpack.c.l.b16 %v343
      %v444 = vunpack.c.l.b16 %v344
      %v445 = vunpack.c.l.b16 %v345
      %v446 = vunpack.c.l.b16 %v346
      %v447 = vunpack.c.l.b16 %v347
      %v448 = vunpack.c.l.b16 %v348
      %v449 = vunpack.c.l.b16 %v349
      %v450 = vunpack.c.l.b16 %v350
      %v451 = vunpack.c.l.b16 %v351
      %v452 = vunpack.c.l.b16 %v352
      %v453 = vunpack.c.l.b16 %v353
      %v454 = vunpack.c.l.b16 %v354
      %v455 = vunpack.c.l.b16 %v355
      %v456 = vunpack.c.l.b16 %v356
      %v457 = vunpack.c.l.b16 %v357
      %v458 = vunpack.c.l.b16 %v358
      %v459 = vunpack.c.l.b16 %v359
      %v460 = vunpack.c.l.b16 %v360
      %v461 = vunpack.c.l.b16 %v361
      %v462 = vunpack.c.l.b16 %v362
      %v463 = vunpack.c.l.b16 %v363
      %v464 = vunpack.c.l.b16 %v364
      %v465 = vunpack.c.l.b16 %v365
      %v466 = vunpack.c.l.b16 %v366
      %v467 = vunpack.c.l.b16 %v367
      %v468 = vunpack.c.l.b16 %v368
      %v469 = vunpack.c.l.b16 %v369
      %v470 = vunpack.c.l.b16 %v370
      %v471 = vunpack.c.l.b16 %v371
      %v472 = vunpack.c.l.b16 %v372
      %v473 = vunpack.c.l.b16 %v373
      %v474 = vunpack.c.l.b16 %v374
      %v475 = vunpack.c.l.b16 %v375
      %v476 = vunpack.c.l.b16 %v376
      %v477 = vunpack.c.l.b16 %v377
      %v478 = vunpack.c.l.b16 %v378
      %v479 = vunpack.c.l.b16 %v379
      %v480 = vunpack.c.l.b16 %v380
      %v481 = vunpack.c.l.b16 %v381
      %v482 = vunpack.c.l.b16 %v382
      %v483 = vunpack.c.l.b16 %v383
      %v484 = vunpack.c.l.b16 %v384
      %v485 = vunpack.c.l.b16 %v385
      %v486 = vpack.c.b16 %v439, %v438
      %v487 = vpack.c.b16 %v441, %v440
      %v488 = vpack.c.b16 %v443, %v442
      %v489 = vpack.c.b16 %v445, %v444
      %v490 = vpack.c.b16 %v447, %v446
      %v491 = vpack.c.b16 %v449, %v448
      %v492 = vpack.c.b16 %v451, %v450
      %v493 = vpack.c.b16 %v453, %v452
      %v494 = vpack.c.b16 %v455, %v454
      %v495 = vpack.c.b16 %v457, %v456
      %v496 = vpack.c.b16 %v459, %v458
      %v497 = vpack.c.b16 %v461, %v460
      %v498 = vpack.c.b16 %v463, %v462
      %v499 = vpack.c.b16 %v465, %v464
      %v500 = vpack.c.b16 %v467, %v466
      %v501 = vpack.c.b16 %v469, %v468
      %v502 = vpack.c.b16 %v471, %v470
      %v503 = vpack.c.b16 %v473, %v472
      %v504 = vpack.c.b16 %v475, %v474
      %v505 = vpack.c.b16 %v477, %v476
      %v506 = vpack.c.b16 %v479, %v478
      %v507 = vpack.c.b16 %v481, %v480
      %v508 = vpack.c.b16 %v483, %v482
      %v509 = vpack.c.b16 %v485, %v484
      %534 = vmatpush.bf16.msra.mxu0 %v493
      %535 = vmatpush.bf16.msra.mxu0 %v492
      %536 = vmatpush.bf16.msra.mxu0 %v491
      %537 = vmatpush.bf16.msra.mxu0 %v490
      %538 = vmatpush.bf16.msra.mxu0 %v489
      %539 = vmatpush.bf16.msra.mxu0 %v488
      %540 = vmatpush.bf16.msra.mxu0 %v487
      %541 = vmatpush.bf16.msra.mxu0 %v486
      %542 = vmatmul.bf16.gmra.mxu0 %v335
      %v543 = vpop.f32.mrf.mxu0
      %v544 = vadd.f32 %v388, %v543
      %v545 = vpop.f32.mrf.mxu0
      %v546 = vadd.f32 %v388, %v545
      %547 = vdwg.mxu0
      %548 = vmatpush.bf16.msra.mxu0 %v501
      %549 = vmatpush.bf16.msra.mxu0 %v500
      %550 = vmatpush.bf16.msra.mxu0 %v499
      %551 = vmatpush.bf16.msra.mxu0 %v498
      %552 = vmatpush.bf16.msra.mxu0 %v497
      %553 = vmatpush.bf16.msra.mxu0 %v496
      %554 = vmatpush.bf16.msra.mxu0 %v495
      %555 = vmatpush.bf16.msra.mxu0 %v494
      %556 = vmatmul.bf16.gmra.mxu0 %v336
      %v557 = vpop.f32.mrf.mxu0
      %v558 = vadd.f32 %v544, %v557
      %v559 = vpop.f32.mrf.mxu0
      %v560 = vadd.f32 %v546, %v559
      %561 = vdwg.mxu0
      %562 = vmatpush.bf16.msra.mxu0 %v509
      %563 = vmatpush.bf16.msra.mxu0 %v508
      %564 = vmatpush.bf16.msra.mxu0 %v507
      %565 = vmatpush.bf16.msra.mxu0 %v506
      %566 = vmatpush.bf16.msra.mxu0 %v505
      %567 = vmatpush.bf16.msra.mxu0 %v504
      %568 = vmatpush.bf16.msra.mxu0 %v503
      %569 = vmatpush.bf16.msra.mxu0 %v502
      %570 = vmatmul.bf16.gmra.mxu0 %v337
      %v571 = vpop.f32.mrf.mxu0
      %v572 = vadd.f32 %v558, %v571
      %v573 = vpop.f32.mrf.mxu0
      %v574 = vadd.f32 %v560, %v573
      %575 = vdwg.mxu0
      %576 = vst [vmem:[%s260] sm:$0xff] %v572
      %577 = vst [vmem:[%s260 + $0x8] sm:$0xff] %v574
      %v578 = vadd.f32 %v572, %v574
      %v579 = vrot.slane %v578, 4
      %v580 = vadd.f32 %v578, %v579
      %v581 = vrot.slane %v580, 2
      %v582 = vadd.f32 %v580, %v581
      %v583 = vrot.slane %v582, 1
      %v584 = vadd.f32 %v582, %v583
      %v585 = vmul.f32 %v572, %v572
      %v586 = vmul.f32 %v574, %v574
      %v587 = vadd.f32 %v585, %v586
      %v588 = vrot.slane %v587, 4
      %v589 = vadd.f32 %v587, %v588
      %v590 = vrot.slane %v589, 2
      %v591 = vadd.f32 %v589, %v590
      %v592 = vrot.slane %v591, 1
      %v593 = vadd.f32 %v591, %v592
      %vm594 = vcmask 1040384
      %v595 = vsel %vm594, %v584, %v593
      %596 = vst [vmem:[%s265] sm:$0x3] %v595
      %s597 = smul.u32 2, %s18
      %p598 = scmp.lt.s32.totalorder %s597, 3
      %s599 = scalar_select %p598, %s597, 3
      %s600 = smul.addr %s599, 8
      %s601 = scalar_lea.vmem %s5, %s600
      %p602 = scmp.lt.s32.totalorder %s18, 1
      %s603 = scalar_select %p602, %s18, 1
      %s604 = smul.addr %s603, 2
      %s605 = scalar_lea.vmem %s6, %s604
      // Predicated region
      $region41: #{residual_block_pallas.4} parent=39 // pred_check
        %p606 = pneg %p146
      $region42: #{residual_block_pallas.4} parent=39 // pred_check_branch
        %608 = sbr.rel (%p606) target = $region44
      $region43: #{residual_block_pallas.4} parent=39 // pred_region
        %s609 = smul.u32 2, %s18
      $region44: #{residual_block_pallas.4} parent=39 // pred_fallthru
        _
      // Predicated region
      $region45: #{residual_block_pallas.4} parent=39 // pred_check
        %p610 = pneg %p172
      $region46: #{residual_block_pallas.4} parent=39 // pred_check_branch
        %612 = sbr.rel (%p610) target = $region48
      $region47: #{residual_block_pallas.4} parent=39 // pred_region
        _
      $region48: #{residual_block_pallas.4} parent=39 // pred_fallthru
        _
    $region40: #{residual_block_pallas.4} parent=5 // pred_fallthru
      _
    %p613 = scmp.le.s32.totalorder 2, %s13
    // Predicated region
    $region49: #{residual_block_pallas.4} parent=5 // pred_check
      %p614 = pneg %p613
    $region50: #{residual_block_pallas.4} parent=5 // pred_check_branch
      %616 = sbr.rel (%p614) target = $region52
    $region51: #{residual_block_pallas.4} parent=5 // pred_region
      %s617 = ssub.s32 %s13, 2
      // Predicated region
      $region53: #{residual_block_pallas.4} parent=51 // pred_check
        %p618 = pneg %p152
      $region54: #{residual_block_pallas.4} parent=51 // pred_check_branch
        %620 = sbr.rel (%p618) target = $region56
      $region55: #{residual_block_pallas.4} parent=51 // pred_region
        %s621 = smul.u32 2, %s19
        %p622 = scmp.lt.s32.totalorder %s621, 3
        %s623 = scalar_select %p622, %s621, 3
        %s624 = smul.addr %s623, 8
        %s625 = scalar_lea.vmem %s5, %s624
      $region56: #{residual_block_pallas.4} parent=51 // pred_fallthru
        _
      // Predicated region
      $region57: #{residual_block_pallas.4} parent=51 // pred_check
        %p626 = pneg %p178
      $region58: #{residual_block_pallas.4} parent=51 // pred_check_branch
        %628 = sbr.rel (%p626) target = $region60
      $region59: #{residual_block_pallas.4} parent=51 // pred_region
        %p629 = scmp.lt.s32.totalorder %s19, 1
        %s630 = scalar_select %p629, %s19, 1
        %s631 = smul.addr %s630, 2
        %s632 = scalar_lea.vmem %s6, %s631
      $region60: #{residual_block_pallas.4} parent=51 // pred_fallthru
        _
    $region52: #{residual_block_pallas.4} parent=5 // pred_fallthru
      _
  $region6: #{residual_block_pallas.4} parent=0 // loop_footer
    %s17 = sadd.s32 1, %s13
  $region7: #{residual_block_pallas.4} parent=0 // loop_footer_branch
    %12 = sbr.rel target = $region3
  $region8: #{residual_block_pallas.4} parent=0 // loop_exit
    _

</llo_original>
